<compile_context>
chip_gen: v7x
topology: tpu7x:2x2x1
jax: 0.10.0
libtpu: 0.0.40
codegen_flags: <defaults>
</compile_context>

<pallas_src>
import functools

import jax
import jax.numpy as jnp
from jax import lax
from jax.experimental import pallas as pl
from jax.experimental.pallas import tpu as pltpu


# Storage dtype for activations / weights fed to the MXU.  Set to
# jnp.bfloat16 on real TPU hardware (half HBM traffic, bf16 MXU rate; f32
# accumulation is kept via preferred_element_type).  float32 here because the
# sandbox interpret/CPU dot path rejects BF16 x BF16 = F32.
ACT_DTYPE = jnp.float32


# ----------------------------------------------------------------------------
# Kernel 1: fused bidirectional LSTM, single invocation.
#   Step 1: xg = X @ [W_ih_f^T | W_ih_b^T] + [b_f | b_b]   (one big matmul)
#   Step 2: fori_loop over time; per step only the two small h @ W_hh dots,
#           forward reads row t, backward reads row T-1-t.
#   Gate layout (reordered in wrapper): [i, f, o | g];
#   c' = f*c + i*g ; h' = o*tanh(c')
# ----------------------------------------------------------------------------
def _bilstm_kernel(x_ref, wih_ref, whh_f_ref, whh_b_ref, b_ref, out_ref,
                   xg_sc, *, seq_len, batch, hh):
    G = 4 * hh

    # Zero the output once: also covers the rows padding T*B up to the head's
    # 512-lane tile multiple, so the head never reads uninitialized memory.
    out_ref[...] = jnp.zeros_like(out_ref)

    # Hoisted input projection for BOTH directions and ALL timesteps.
    # TODO(synk): chunk over time (double-buffered VMEM window) at production
    #             shapes; here the full projection fits VMEM comfortably.
    xg_sc[...] = (
        jnp.dot(x_ref[...], wih_ref[...], preferred_element_type=jnp.float32)
        + b_ref[...]
    )

    def cell(gates, c):
        # [i | f | o | g]: one fused sigmoid over the contiguous 3*Hh slice.
        sig = jax.nn.sigmoid(gates[:, :3 * hh])
        i_g = sig[:, 0 * hh:1 * hh]
        f_g = sig[:, 1 * hh:2 * hh]
        o_g = sig[:, 2 * hh:3 * hh]
        g_g = jnp.tanh(gates[:, 3 * hh:4 * hh])
        c = f_g * c + i_g * g_g
        h = o_g * jnp.tanh(c)
        return h, c

    def step(t, carry):
        h_f, c_f, h_b, c_b = carry
        row_f = pl.multiple_of(t * batch, batch)                  # batch % 8 == 0
        row_b = pl.multiple_of((seq_len - 1 - t) * batch, batch)
        # TODO(synk): when 4*Hh fits one MXU weight tile, keep W_hh resident
        #             via pltpu.matmul_push_rhs / matmul_acc_lhs per step.
        g_f = xg_sc[pl.ds(row_f, batch), pl.ds(0, G)] + jnp.dot(
            h_f.astype(whh_f_ref.dtype), whh_f_ref[...],
            preferred_element_type=jnp.float32)
        g_b = xg_sc[pl.ds(row_b, batch), pl.ds(G, G)] + jnp.dot(
            h_b.astype(whh_b_ref.dtype), whh_b_ref[...],
            preferred_element_type=jnp.float32)
        h_f, c_f = cell(g_f, c_f)
        h_b, c_b = cell(g_b, c_b)
        out_ref[pl.ds(row_f, batch), pl.ds(0, hh)] = h_f.astype(out_ref.dtype)
        out_ref[pl.ds(row_b, batch), pl.ds(hh, hh)] = h_b.astype(out_ref.dtype)
        return (h_f, c_f, h_b, c_b)

    zero = jnp.zeros((batch, hh), jnp.float32)
    lax.fori_loop(0, seq_len, step, (zero, zero, zero, zero))


def bilstm(x_flat, w_ih2, w_hh_f, w_hh_b, bias2, *, seq_len, batch, n_pad):
    """x_flat: (T*B, H) time-major (row = t*B + b).
    Returns (n_pad, 2*Hh) features (fwd | bwd), rows >= T*B zero-filled."""
    tb, H = x_flat.shape
    hh = w_hh_f.shape[0]
    G = 4 * hh
    kern = functools.partial(_bilstm_kernel, seq_len=seq_len, batch=batch,
                             hh=hh)
    # Explicit VMEM budget: blocks + xg scratch, x2 headroom, capped at the
    # v7x per-TensorCore 64 MiB.
    elt = 4
    vmem_bytes = elt * (x_flat.size + w_ih2.size + w_hh_f.size + w_hh_b.size
                        + bias2.size + n_pad * 2 * hh + tb * 2 * G)
    vmem_limit = min(2 * vmem_bytes + (16 << 20), 64 << 20)
    return pl.pallas_call(
        kern,
        out_shape=jax.ShapeDtypeStruct((n_pad, 2 * hh), ACT_DTYPE),
        grid_spec=pltpu.PrefetchScalarGridSpec(
            num_scalar_prefetch=0,
            grid=(1,),
            in_specs=[
                pl.BlockSpec((tb, H), lambda i: (0, 0)),        # activations
                pl.BlockSpec((H, 2 * G), lambda i: (0, 0)),     # [Wih_f|Wih_b]^T
                pl.BlockSpec((hh, G), lambda i: (0, 0)),        # Whh_f^T
                pl.BlockSpec((hh, G), lambda i: (0, 0)),        # Whh_b^T
                pl.BlockSpec((1, 2 * G), lambda i: (0, 0)),     # biases
            ],
            out_specs=pl.BlockSpec((n_pad, 2 * hh), lambda i: (0, 0)),
            scratch_shapes=[pltpu.VMEM((tb, 2 * G), jnp.float32)],
        ),
        compiler_params=pltpu.CompilerParams(
            dimension_semantics=("arbitrary",),
            vmem_limit_bytes=vmem_limit),
    )(x_flat, w_ih2, w_hh_f, w_hh_b, bias2)


# ----------------------------------------------------------------------------
# Kernel 2: output head, lane-dense over rows.
#   logits^T (C, tn) = W^T (C,H) contracted with feats tile (tn,H) on H
#   (dot_general, no materialized transpose), log_softmax over classes
#   (sublane axis), label-smoothed masked NLL loss, correct count
#   (resident (1,1) accumulators), argmax predictions (1, tn).
# ----------------------------------------------------------------------------
def _head_kernel(feats_ref, wT_ref, b_ref, label_ref,
                 loss_ref, correct_ref, pred_ref):
    i = pl.program_id(0)

    @pl.when(i == 0)
    def _():
        loss_ref[...] = jnp.zeros_like(loss_ref)
        correct_ref[...] = jnp.zeros_like(correct_ref)

    logits = lax.dot_general(
        wT_ref[...], feats_ref[...].astype(wT_ref.dtype),
        dimension_numbers=(((1,), (1,)), ((), ())),
        preferred_element_type=jnp.float32) + b_ref[...]        # (C, tn) f32
    C, tn = logits.shape

    # log_softmax over the class (sublane) axis.
    m = jnp.max(logits, axis=0, keepdims=True)                  # (1, tn)
    lse = m + jnp.log(jnp.sum(jnp.exp(logits - m), axis=0, keepdims=True))
    logp = logits - lse                                         # (C, tn)

    label = label_ref[...]                                      # (1, tn) int32
    cls = lax.broadcasted_iota(jnp.int32, (C, tn), 0)
    one_hot = (cls == label).astype(jnp.float32)                # scatter_(1,..)
    eps = 0.1
    smooth = (1.0 - eps) * one_hot + eps / C
    numer = -jnp.sum(logp * smooth, axis=0, keepdims=True)      # (1, tn)
    mask = (label > 0).astype(jnp.float32)                      # (1, tn)

    # argmax over classes (first index of the max, matching jnp/torch argmax).
    pred = jnp.min(jnp.where(logits == m, cls, C), axis=0, keepdims=True)
    pred_ref[...] = pred.astype(jnp.int32)

    loss_ref[...] += jnp.sum(mask * numer, axis=1, keepdims=True)
    correct_ref[...] += jnp.sum(mask * (pred == label).astype(jnp.float32),
                                axis=1, keepdims=True)


def head(feats_pad, w_T, b_col, labT_pad, *, tn):
    """feats_pad: (n_pad, H); w_T: (C, H); b_col: (C,1); labT_pad: (1, n_pad).
    Returns (loss, correct, pred(1, n_pad))."""
    n_pad, Hf = feats_pad.shape
    C = w_T.shape[0]
    loss, correct, pred = pl.pallas_call(
        _head_kernel,
        out_shape=(
            jax.ShapeDtypeStruct((1, 1), jnp.float32),
            jax.ShapeDtypeStruct((1, 1), jnp.float32),
            jax.ShapeDtypeStruct((1, n_pad), jnp.int32),
        ),
        grid_spec=pltpu.PrefetchScalarGridSpec(
            num_scalar_prefetch=0,
            grid=(n_pad // tn,),
            in_specs=[
                pl.BlockSpec((tn, Hf), lambda i: (i, 0)),
                pl.BlockSpec((C, Hf), lambda i: (0, 0)),
                pl.BlockSpec((C, 1), lambda i: (0, 0)),
                pl.BlockSpec((1, tn), lambda i: (0, i)),
            ],
            out_specs=(
                pl.BlockSpec((1, 1), lambda i: (0, 0)),         # loss accum
                pl.BlockSpec((1, 1), lambda i: (0, 0)),         # correct accum
                pl.BlockSpec((1, tn), lambda i: (0, i)),        # lane-dense pred
            ),
        ),
        compiler_params=pltpu.CompilerParams(
            dimension_semantics=("arbitrary",)),
    )(feats_pad, w_T, b_col, labT_pad)
    return loss[0, 0], correct[0, 0], pred


# ----------------------------------------------------------------------------
# Full forward pass (glue in plain JAX, hot paths in Pallas).
# ----------------------------------------------------------------------------
def _reorder_gates(w, hh):
    """PyTorch gate row order [i, f, g, o] -> kernel order [i, f, o, g]."""
    return jnp.concatenate([w[:2 * hh], w[3 * hh:4 * hh], w[2 * hh:3 * hh]],
                           axis=0)


def only_lstm_forward(params, src, label):
    """src, label: int32 (B, T). Returns (loss, correct, predict, label_flat)."""
    B, T = src.shape
    H = params["w_ih_f"].shape[1]
    Hh = params["w_hh_f"].shape[1]
    G = 4 * Hh
    C = params["w_out"].shape[1]

    # Pad batch to a sublane multiple (8) so every per-timestep VMEM slice in
    # the recurrence is tile aligned.  Padded rows carry token/label 0 and
    # are excluded by the label mask / dropped from the predictions.
    B_pad = ((B + 7) // 8) * 8
    src_p = jnp.zeros((B_pad, T), src.dtype).at[:B].set(src)
    lab_p = jnp.zeros((B_pad, T), jnp.int32).at[:B].set(label.astype(jnp.int32))

    # Embedding lookup directly in time-major order (gather on the transposed
    # tiny int32 ids -> no HBM transpose of the activations).
    x = jnp.take(params["word_emb"].astype(ACT_DTYPE), src_p.T, axis=0)
    x = x.reshape(T * B_pad, H)                                 # row = t*B_pad+b

    # Weights: gate-reordered [i,f,o,g], pre-transposed; the two directions'
    # input projections are concatenated so the hoisted matmul is one MXU pass.
    w_ih2 = jnp.concatenate(
        [_reorder_gates(params["w_ih_f"], Hh).T,
         _reorder_gates(params["w_ih_b"], Hh).T], axis=1).astype(ACT_DTYPE)
    w_hh_f = _reorder_gates(params["w_hh_f"], Hh).T.astype(ACT_DTYPE)
    w_hh_b = _reorder_gates(params["w_hh_b"], Hh).T.astype(ACT_DTYPE)
    bias2 = jnp.concatenate(
        [_reorder_gates(params["b_f"], Hh),
         _reorder_gates(params["b_b"], Hh)]).reshape(1, 2 * G).astype(jnp.float32)

    # Head tiling: always 512-lane tiles; the LSTM kernel zero-fills the rows
    # padding N up to the tile multiple (label 0 there -> masked).
    N = T * B_pad
    TN = 512
    n_pad = ((N + TN - 1) // TN) * TN

    feats = bilstm(x, w_ih2, w_hh_f, w_hh_b, bias2,
                   seq_len=T, batch=B_pad, n_pad=n_pad)         # (n_pad, 2*Hh)

    # dropout -> identity (inference).
    labT = jnp.zeros((1, n_pad), jnp.int32).at[0, :N].set(lab_p.T.reshape(N))

    w_T = params["w_out"].T.astype(ACT_DTYPE)                   # (C, H)
    b_col = params["b_out"].reshape(C, 1).astype(jnp.float32)

    loss, correct, pred_row = head(feats, w_T, b_col, labT, tn=TN)

    # Un-permute predictions back to the module's batch-major (B*T,) order.
    pred = pred_row[0, :N].reshape(T, B_pad).T[:B].reshape(B * T)
    return loss, correct, pred, label.reshape(-1)


# ----------------------------------------------------------------------------
# Pure-JAX reference (f32) for correctness checking only.
# ----------------------------------------------------------------------------
def _reference_forward(params, src, label):
    B, T = src.shape
    Hh = params["w_hh_f"].shape[1]
    emb = jnp.take(params["word_emb"], src, axis=0)             # (B, T, H)
    x = jnp.transpose(emb, (1, 0, 2))                           # (T, B, H)

    def run_dir(x_tbh, w_ih, w_hh, b):
        def step(carry, x_t):
            h, c = carry
            g = x_t @ w_ih.T + b + h @ w_hh.T
            i = jax.nn.sigmoid(g[:, :Hh])
            f = jax.nn.sigmoid(g[:, Hh:2 * Hh])
            gg = jnp.tanh(g[:, 2 * Hh:3 * Hh])
            o = jax.nn.sigmoid(g[:, 3 * Hh:])
            c = f * c + i * gg
            h = o * jnp.tanh(c)
            return (h, c), h

        init = (jnp.zeros((B, Hh), jnp.float32),
                jnp.zeros((B, Hh), jnp.float32))
        _, hs = lax.scan(step, init, x_tbh)
        return hs                                               # (T, B, Hh)

    out_f = run_dir(x, params["w_ih_f"], params["w_hh_f"], params["b_f"])
    out_b = run_dir(x[::-1], params["w_ih_b"], params["w_hh_b"],
                    params["b_b"])[::-1]
    feats = jnp.transpose(jnp.concatenate([out_f, out_b], -1),
                          (1, 0, 2)).reshape(B * T, 2 * Hh)

    logits = feats @ params["w_out"] + params["b_out"]
    logp = jax.nn.log_softmax(logits, axis=-1)
    C = logits.shape[-1]
    lab = label.reshape(-1)
    one_hot = jax.nn.one_hot(lab, C, dtype=jnp.float32)
    smooth = 0.9 * one_hot + 0.1 / C
    num = -jnp.sum(logp * smooth, axis=1)
    mask = (lab > 0).astype(jnp.float32)
    loss = jnp.sum(mask * num)
    pred = jnp.argmax(logp, axis=-1)
    correct = jnp.sum(mask * (pred == lab).astype(jnp.float32))
    return loss, correct, pred, lab


if __name__ == "__main__":
    # Small shapes consistent with the module's forward.
    B, T = 2, 8                 # batch, seq length
    H = 32                      # hidden_size
    Hh = H // 2                 # per-direction LSTM hidden
    V = 50                      # vocab size
    C = 7                       # tagset_size

    key = jax.random.PRNGKey(0)
    ks = jax.random.split(key, 11)
    s = 0.1
    params = {
        "word_emb": jax.random.normal(ks[0], (V, H), jnp.float32) * s,
        "w_ih_f": jax.random.normal(ks[1], (4 * Hh, H), jnp.float32) * s,
        "w_hh_f": jax.random.normal(ks[2], (4 * Hh, Hh), jnp.float32) * s,
        "b_f":    jax.random.normal(ks[3], (4 * Hh,), jnp.float32) * s,   # b_ih+b_hh
        "w_ih_b": jax.random.normal(ks[4], (4 * Hh, H), jnp.float32) * s,
        "w_hh_b": jax.random.normal(ks[5], (4 * Hh, Hh), jnp.float32) * s,
        "b_b":    jax.random.normal(ks[6], (4 * Hh,), jnp.float32) * s,
        "w_out":  jax.random.normal(ks[7], (H, C), jnp.float32) * s,
        "b_out":  jax.random.normal(ks[8], (C,), jnp.float32) * s,
    }

    src = jax.random.randint(ks[9], (B, T), 1, V, dtype=jnp.int32)
    label = jax.random.randint(ks[10], (B, T), 0, C, dtype=jnp.int32)

    fwd = jax.jit(only_lstm_forward)
    loss, correct, predict, label_flat = jax.block_until_ready(
        fwd(params, src, label))

    # Correctness check against a pure-JAX reference.
    r_loss, r_correct, r_pred, r_lab = _reference_forward(params, src, label)
    assert jnp.allclose(loss, r_loss, rtol=1e-3, atol=1e-3), (loss, r_loss)
    assert jnp.allclose(correct, r_correct, atol=1e-3), (correct, r_correct)
    assert bool(jnp.all(predict == r_pred))
    assert bool(jnp.all(label_flat == r_lab))

    print("KERNEL_OK")
</pallas_src>

<mosaic_0001>
module attributes {stable_mosaic.version = 11 : i64} {
  func.func @_bilstm_kernel(%arg0: i32, %arg1: memref<64x32xf32, #tpu.memory_space<vmem>>, %arg2: memref<32x128xf32, #tpu.memory_space<vmem>>, %arg3: memref<16x64xf32, #tpu.memory_space<vmem>>, %arg4: memref<16x64xf32, #tpu.memory_space<vmem>>, %arg5: memref<1x128xf32, #tpu.memory_space<vmem>>, %arg6: memref<512x32xf32, #tpu.memory_space<vmem>>, %arg7: memref<64x128xf32, #tpu.memory_space<vmem>>) attributes {dimension_semantics = [#tpu.dimension_semantics<arbitrary>], iteration_bounds = array<i64: 1>, scalar_prefetch = 0 : i64, scratch_operands = 1 : i64, tpu.core_type = #tpu.core_type<tc>, window_params = [{pipeline_mode = #tpu.pipeline_mode<synchronous>, transform_indices = @transform_0, window_bounds = array<i64: 64, 32>}, {pipeline_mode = #tpu.pipeline_mode<synchronous>, transform_indices = @transform_1, window_bounds = array<i64: 32, 128>}, {pipeline_mode = #tpu.pipeline_mode<synchronous>, transform_indices = @transform_2, window_bounds = array<i64: 16, 64>}, {pipeline_mode = #tpu.pipeline_mode<synchronous>, transform_indices = @transform_3, window_bounds = array<i64: 16, 64>}, {pipeline_mode = #tpu.pipeline_mode<synchronous>, transform_indices = @transform_4, window_bounds = array<i64: 1, 128>}, {pipeline_mode = #tpu.pipeline_mode<synchronous>, transform_indices = @transform_5, window_bounds = array<i64: 512, 32>}]} {
    %cst = arith.constant 0.000000e+00 : f32
    %0 = vector.broadcast %cst : f32 to vector<512x32xf32>
    %c0 = arith.constant 0 : index
    %c0_0 = arith.constant 0 : index
    %1 = vector.load %arg6[%c0, %c0_0] : memref<512x32xf32, #tpu.memory_space<vmem>>, vector<512x32xf32>
    tpu.vector_store %arg6[%c0, %c0_0], %0 {strides = array<i32>} : memref<512x32xf32, #tpu.memory_space<vmem>>, vector<512x32xf32>,
    %c0_1 = arith.constant 0 : index
    %c0_2 = arith.constant 0 : index
    %2 = vector.load %arg1[%c0_1, %c0_2] : memref<64x32xf32, #tpu.memory_space<vmem>>, vector<64x32xf32>
    %c0_3 = arith.constant 0 : index
    %c0_4 = arith.constant 0 : index
    %3 = vector.load %arg2[%c0_3, %c0_4] : memref<32x128xf32, #tpu.memory_space<vmem>>, vector<32x128xf32>
    %cst_5 = arith.constant dense<0.000000e+00> : vector<64x128xf32>
    %4 = tpu.matmul %2, %3, %cst_5 {dimension_numbers = #tpu.dot_dimension_numbers<[1], [0], [0], [1], [0, 0, 1, 1], [], []>} : vector<64x32xf32>, vector<32x128xf32>, vector<64x128xf32> -> vector<64x128xf32>
    %c0_6 = arith.constant 0 : index
    %c0_7 = arith.constant 0 : index
    %5 = vector.load %arg5[%c0_6, %c0_7] : memref<1x128xf32, #tpu.memory_space<vmem>>, vector<1x128xf32>
    %6 = vector.broadcast %5 : vector<1x128xf32> to vector<64x128xf32>
    %7 = arith.addf %4, %6 : vector<64x128xf32>
    %c0_8 = arith.constant 0 : index
    %c0_9 = arith.constant 0 : index
    %8 = vector.load %arg7[%c0_8, %c0_9] : memref<64x128xf32, #tpu.memory_space<vmem>>, vector<64x128xf32>
    tpu.vector_store %arg7[%c0_8, %c0_9], %7 {strides = array<i32>} : memref<64x128xf32, #tpu.memory_space<vmem>>, vector<64x128xf32>,
    %cst_10 = arith.constant 0.000000e+00 : f32
    %9 = vector.broadcast %cst_10 : f32 to vector<8x16xf32>
    %c0_i32 = arith.constant 0 : i32
    %c8_i32 = arith.constant 8 : i32
    %10 = arith.addi %c0_i32, %c8_i32 : i32
    %c1_i32 = arith.constant 1 : i32
    %11:4 = scf.for %arg8 = %c0_i32 to %10 step %c1_i32 iter_args(%arg9 = %9, %arg10 = %9, %arg11 = %9, %arg12 = %9) -> (vector<8x16xf32>, vector<8x16xf32>, vector<8x16xf32>, vector<8x16xf32>)  : i32 {
      %c8_i32_12 = arith.constant 8 : i32
      %12 = arith.muli %arg8, %c8_i32_12 : i32
      %13 = tpu.assume_multiple %12, 8 : i32
      %c7_i32 = arith.constant 7 : i32
      %14 = arith.subi %c7_i32, %arg8 : i32
      %c8_i32_13 = arith.constant 8 : i32
      %15 = arith.muli %14, %c8_i32_13 : i32
      %16 = tpu.assume_multiple %15, 8 : i32
      %17 = arith.index_cast %13 : i32 to index
      %c0_14 = arith.constant 0 : index
      %18 = vector.load %arg7[%17, %c0_14] : memref<64x128xf32, #tpu.memory_space<vmem>>, vector<8x64xf32>
      %c0_15 = arith.constant 0 : index
      %c0_16 = arith.constant 0 : index
      %19 = vector.load %arg3[%c0_15, %c0_16] : memref<16x64xf32, #tpu.memory_space<vmem>>, vector<16x64xf32>
      %cst_17 = arith.constant dense<0.000000e+00> : vector<8x64xf32>
      %20 = tpu.matmul %arg9, %19, %cst_17 {dimension_numbers = #tpu.dot_dimension_numbers<[1], [0], [0], [1], [0, 0, 1, 1], [], []>} : vector<8x16xf32>, vector<16x64xf32>, vector<8x64xf32> -> vector<8x64xf32>
      %21 = arith.addf %18, %20 : vector<8x64xf32>
      %22 = arith.index_cast %16 : i32 to index
      %c64 = arith.constant 64 : index
      %23 = vector.load %arg7[%22, %c64] : memref<64x128xf32, #tpu.memory_space<vmem>>, vector<8x64xf32>
      %c0_18 = arith.constant 0 : index
      %c0_19 = arith.constant 0 : index
      %24 = vector.load %arg4[%c0_18, %c0_19] : memref<16x64xf32, #tpu.memory_space<vmem>>, vector<16x64xf32>
      %cst_20 = arith.constant dense<0.000000e+00> : vector<8x64xf32>
      %25 = tpu.matmul %arg11, %24, %cst_20 {dimension_numbers = #tpu.dot_dimension_numbers<[1], [0], [0], [1], [0, 0, 1, 1], [], []>} : vector<8x16xf32>, vector<16x64xf32>, vector<8x64xf32> -> vector<8x64xf32>
      %26 = arith.addf %23, %25 : vector<8x64xf32>
      %27 = vector.extract_strided_slice %21 {offsets = [0, 0], sizes = [8, 48], strides = [1, 1]} : vector<8x64xf32> to vector<8x48xf32>
      %28 = arith.negf %27 : vector<8x48xf32>
      %29 = math.exp %28 : vector<8x48xf32>
      %cst_21 = arith.constant 1.000000e+00 : f32
      %30 = vector.broadcast %cst_21 : f32 to vector<8x48xf32>
      %31 = arith.addf %30, %29 : vector<8x48xf32>
      %32 = arith.divf %30, %31 : vector<8x48xf32>
      %33 = vector.extract_strided_slice %32 {offsets = [0, 0], sizes = [8, 16], strides = [1, 1]} : vector<8x48xf32> to vector<8x16xf32>
      %34 = vector.extract_strided_slice %32 {offsets = [0, 16], sizes = [8, 16], strides = [1, 1]} : vector<8x48xf32> to vector<8x16xf32>
      %35 = vector.extract_strided_slice %32 {offsets = [0, 32], sizes = [8, 16], strides = [1, 1]} : vector<8x48xf32> to vector<8x16xf32>
      %36 = vector.extract_strided_slice %21 {offsets = [0, 48], sizes = [8, 16], strides = [1, 1]} : vector<8x64xf32> to vector<8x16xf32>
      %37 = math.tanh %36 : vector<8x16xf32>
      %38 = arith.mulf %34, %arg10 : vector<8x16xf32>
      %39 = arith.mulf %33, %37 : vector<8x16xf32>
      %40 = arith.addf %38, %39 : vector<8x16xf32>
      %41 = math.tanh %40 : vector<8x16xf32>
      %42 = arith.mulf %35, %41 : vector<8x16xf32>
      %43 = vector.extract_strided_slice %26 {offsets = [0, 0], sizes = [8, 48], strides = [1, 1]} : vector<8x64xf32> to vector<8x48xf32>
      %44 = arith.negf %43 : vector<8x48xf32>
      %45 = math.exp %44 : vector<8x48xf32>
      %cst_22 = arith.constant 1.000000e+00 : f32
      %46 = vector.broadcast %cst_22 : f32 to vector<8x48xf32>
      %47 = arith.addf %46, %45 : vector<8x48xf32>
      %48 = arith.divf %46, %47 : vector<8x48xf32>
      %49 = vector.extract_strided_slice %48 {offsets = [0, 0], sizes = [8, 16], strides = [1, 1]} : vector<8x48xf32> to vector<8x16xf32>
      %50 = vector.extract_strided_slice %48 {offsets = [0, 16], sizes = [8, 16], strides = [1, 1]} : vector<8x48xf32> to vector<8x16xf32>
      %51 = vector.extract_strided_slice %48 {offsets = [0, 32], sizes = [8, 16], strides = [1, 1]} : vector<8x48xf32> to vector<8x16xf32>
      %52 = vector.extract_strided_slice %26 {offsets = [0, 48], sizes = [8, 16], strides = [1, 1]} : vector<8x64xf32> to vector<8x16xf32>
      %53 = math.tanh %52 : vector<8x16xf32>
      %54 = arith.mulf %50, %arg12 : vector<8x16xf32>
      %55 = arith.mulf %49, %53 : vector<8x16xf32>
      %56 = arith.addf %54, %55 : vector<8x16xf32>
      %57 = math.tanh %56 : vector<8x16xf32>
      %58 = arith.mulf %51, %57 : vector<8x16xf32>
      %59 = arith.index_cast %13 : i32 to index
      %c0_23 = arith.constant 0 : index
      %60 = vector.load %arg6[%59, %c0_23] : memref<512x32xf32, #tpu.memory_space<vmem>>, vector<8x16xf32>
      tpu.vector_store %arg6[%59, %c0_23], %42 {strides = array<i32>} : memref<512x32xf32, #tpu.memory_space<vmem>>, vector<8x16xf32>,
      %61 = arith.index_cast %16 : i32 to index
      %c16 = arith.constant 16 : index
      %62 = vector.load %arg6[%61, %c16] : memref<512x32xf32, #tpu.memory_space<vmem>>, vector<8x16xf32>
      tpu.vector_store %arg6[%61, %c16], %58 {strides = array<i32>} : memref<512x32xf32, #tpu.memory_space<vmem>>, vector<8x16xf32>,
      scf.yield %42, %40, %58, %56 : vector<8x16xf32>, vector<8x16xf32>, vector<8x16xf32>, vector<8x16xf32>
    }
    %c8_i32_11 = arith.constant 8 : i32
    return
  }
  func.func @transform_0(%arg0: i32) -> (i32, i32) {
    %c0_i32 = arith.constant 0 : i32
    %c0_i32_0 = arith.constant 0 : i32
    %c0_i32_1 = arith.constant 0 : i32
    return %c0_i32, %c0_i32_0 : i32, i32
  }
  func.func @transform_1(%arg0: i32) -> (i32, i32) {
    %c0_i32 = arith.constant 0 : i32
    %c0_i32_0 = arith.constant 0 : i32
    %c0_i32_1 = arith.constant 0 : i32
    return %c0_i32, %c0_i32_0 : i32, i32
  }
  func.func @transform_2(%arg0: i32) -> (i32, i32) {
    %c0_i32 = arith.constant 0 : i32
    %c0_i32_0 = arith.constant 0 : i32
    %c0_i32_1 = arith.constant 0 : i32
    return %c0_i32, %c0_i32_0 : i32, i32
  }
  func.func @transform_3(%arg0: i32) -> (i32, i32) {
    %c0_i32 = arith.constant 0 : i32
    %c0_i32_0 = arith.constant 0 : i32
    %c0_i32_1 = arith.constant 0 : i32
    return %c0_i32, %c0_i32_0 : i32, i32
  }
  func.func @transform_4(%arg0: i32) -> (i32, i32) {
    %c0_i32 = arith.constant 0 : i32
    %c0_i32_0 = arith.constant 0 : i32
    %c0_i32_1 = arith.constant 0 : i32
    return %c0_i32, %c0_i32_0 : i32, i32
  }
  func.func @transform_5(%arg0: i32) -> (i32, i32) {
    %c0_i32 = arith.constant 0 : i32
    %c0_i32_0 = arith.constant 0 : i32
    %c0_i32_1 = arith.constant 0 : i32
    return %c0_i32, %c0_i32_0 : i32, i32
  }
}

module attributes {stable_mosaic.version = 11 : i64} {
  func.func @_head_kernel(%arg0: i32, %arg1: memref<512x32xf32, #tpu.memory_space<vmem>>, %arg2: memref<7x32xf32, #tpu.memory_space<vmem>>, %arg3: memref<7x1xf32, #tpu.memory_space<vmem>>, %arg4: memref<1x512xi32, #tpu.memory_space<vmem>>, %arg5: memref<1x1xf32, #tpu.memory_space<vmem>>, %arg6: memref<1x1xf32, #tpu.memory_space<vmem>>, %arg7: memref<1x512xi32, #tpu.memory_space<vmem>>) attributes {dimension_semantics = [#tpu.dimension_semantics<arbitrary>], iteration_bounds = array<i64: 1>, scalar_prefetch = 0 : i64, scratch_operands = 0 : i64, tpu.core_type = #tpu.core_type<tc>, window_params = [{transform_indices = @transform_0, window_bounds = array<i64: 512, 32>}, {pipeline_mode = #tpu.pipeline_mode<synchronous>, transform_indices = @transform_1, window_bounds = array<i64: 7, 32>}, {pipeline_mode = #tpu.pipeline_mode<synchronous>, transform_indices = @transform_2, window_bounds = array<i64: 7, 1>}, {transform_indices = @transform_3, window_bounds = array<i64: 1, 512>}, {pipeline_mode = #tpu.pipeline_mode<synchronous>, transform_indices = @transform_4, window_bounds = array<i64: 1, 1>}, {pipeline_mode = #tpu.pipeline_mode<synchronous>, transform_indices = @transform_5, window_bounds = array<i64: 1, 1>}, {transform_indices = @transform_6, window_bounds = array<i64: 1, 512>}]} {
    %c0_i32 = arith.constant 0 : i32
    %0 = arith.cmpi eq, %arg0, %c0_i32 : i32
    %1 = arith.extui %0 : i1 to i32
    %c0_i32_0 = arith.constant 0 : i32
    %2 = arith.cmpi ne, %1, %c0_i32_0 : i32
    scf.if %2 {
      %cst_28 = arith.constant 0.000000e+00 : f32
      %61 = vector.broadcast %cst_28 : f32 to vector<1x1xf32>
      %c0_29 = arith.constant 0 : index
      %c0_30 = arith.constant 0 : index
      %62 = vector.load %arg5[%c0_29, %c0_30] : memref<1x1xf32, #tpu.memory_space<vmem>>, vector<1x1xf32>
      tpu.vector_store %arg5[%c0_29, %c0_30], %61 {strides = array<i32>} : memref<1x1xf32, #tpu.memory_space<vmem>>, vector<1x1xf32>,
      %cst_31 = arith.constant 0.000000e+00 : f32
      %63 = vector.broadcast %cst_31 : f32 to vector<1x1xf32>
      %c0_32 = arith.constant 0 : index
      %c0_33 = arith.constant 0 : index
      %64 = vector.load %arg6[%c0_32, %c0_33] : memref<1x1xf32, #tpu.memory_space<vmem>>, vector<1x1xf32>
      tpu.vector_store %arg6[%c0_32, %c0_33], %63 {strides = array<i32>} : memref<1x1xf32, #tpu.memory_space<vmem>>, vector<1x1xf32>,
    } else {
    }
    %c0 = arith.constant 0 : index
    %c0_1 = arith.constant 0 : index
    %3 = vector.load %arg2[%c0, %c0_1] : memref<7x32xf32, #tpu.memory_space<vmem>>, vector<7x32xf32>
    %c0_2 = arith.constant 0 : index
    %c0_3 = arith.constant 0 : index
    %4 = vector.load %arg1[%c0_2, %c0_3] : memref<512x32xf32, #tpu.memory_space<vmem>>, vector<512x32xf32>
    %cst = arith.constant dense<0.000000e+00> : vector<7x512xf32>
    %5 = tpu.matmul %3, %4, %cst {dimension_numbers = #tpu.dot_dimension_numbers<[1], [1], [0], [0], [0, 0, 1, 0], [], []>} : vector<7x32xf32>, vector<512x32xf32>, vector<7x512xf32> -> vector<7x512xf32>
    %c0_4 = arith.constant 0 : index
    %c0_5 = arith.constant 0 : index
    %6 = vector.load %arg3[%c0_4, %c0_5] : memref<7x1xf32, #tpu.memory_space<vmem>>, vector<7x1xf32>
    %7 = vector.broadcast %6 : vector<7x1xf32> to vector<7x512xf32>
    %8 = arith.addf %5, %7 : vector<7x512xf32>
    %cst_6 = arith.constant dense<0xFF800000> : vector<512xf32>
    %9 = vector.multi_reduction <maximumf>, %8, %cst_6 [0] : vector<7x512xf32> to vector<512xf32>
    %10 = vector.shape_cast %9 : vector<512xf32> to vector<1x512xf32>
    %11 = vector.broadcast %10 : vector<1x512xf32> to vector<7x512xf32>
    %12 = arith.subf %8, %11 : vector<7x512xf32>
    %13 = math.exp %12 : vector<7x512xf32>
    %cst_7 = arith.constant dense<0.000000e+00> : vector<512xf32>
    %14 = vector.multi_reduction <add>, %13, %cst_7 [0] : vector<7x512xf32> to vector<512xf32>
    %15 = vector.shape_cast %14 : vector<512xf32> to vector<1x512xf32>
    %16 = math.log %15 : vector<1x512xf32>
    %17 = arith.addf %10, %16 : vector<1x512xf32>
    %18 = vector.broadcast %17 : vector<1x512xf32> to vector<7x512xf32>
    %19 = arith.subf %8, %18 : vector<7x512xf32>
    %c0_8 = arith.constant 0 : index
    %c0_9 = arith.constant 0 : index
    %20 = vector.load %arg4[%c0_8, %c0_9] : memref<1x512xi32, #tpu.memory_space<vmem>>, vector<1x512xi32>
    %21 = tpu.iota {dimensions = array<i32: 0>} : vector<7x512xi32>
    %22 = vector.broadcast %20 : vector<1x512xi32> to vector<7x512xi32>
    %23 = arith.cmpi eq, %21, %22 : vector<7x512xi32>
    %24 = arith.extui %23 : vector<7x512xi1> to vector<7x512xi32>
    %25 = arith.sitofp %24 : vector<7x512xi32> to vector<7x512xf32>
    %cst_10 = arith.constant 0.899999976 : f32
    %26 = vector.broadcast %cst_10 : f32 to vector<7x512xf32>
    %27 = arith.mulf %26, %25 : vector<7x512xf32>
    %cst_11 = arith.constant 0.0142857144 : f32
    %28 = vector.broadcast %cst_11 : f32 to vector<7x512xf32>
    %29 = arith.addf %27, %28 : vector<7x512xf32>
    %30 = arith.mulf %19, %29 : vector<7x512xf32>
    %cst_12 = arith.constant dense<0.000000e+00> : vector<512xf32>
    %31 = vector.multi_reduction <add>, %30, %cst_12 [0] : vector<7x512xf32> to vector<512xf32>
    %32 = vector.shape_cast %31 : vector<512xf32> to vector<1x512xf32>
    %cst_13 = arith.constant 0.000000e+00 : f32
    %33 = vector.broadcast %cst_13 : f32 to vector<1x512xf32>
    %34 = arith.subf %33, %32 : vector<1x512xf32>
    %c0_i32_14 = arith.constant 0 : i32
    %35 = vector.broadcast %c0_i32_14 : i32 to vector<1x512xi32>
    %36 = arith.cmpi sgt, %20, %35 : vector<1x512xi32>
    %37 = arith.extui %36 : vector<1x512xi1> to vector<1x512xi32>
    %38 = arith.sitofp %37 : vector<1x512xi32> to vector<1x512xf32>
    %39 = vector.broadcast %10 : vector<1x512xf32> to vector<7x512xf32>
    %40 = arith.cmpf oeq, %8, %39 : vector<7x512xf32>
    %c7_i32 = arith.constant 7 : i32
    %41 = vector.broadcast %c7_i32 : i32 to vector<7x512xi32>
    %42 = arith.select %40, %21, %41 : vector<7x512xi1>, vector<7x512xi32>
    %cst_15 = arith.constant dense<2147483647> : vector<512xi32>
    %43 = vector.multi_reduction <minsi>, %42, %cst_15 [0] : vector<7x512xi32> to vector<512xi32>
    %44 = vector.shape_cast %43 : vector<512xi32> to vector<1x512xi32>
    %c0_16 = arith.constant 0 : index
    %c0_17 = arith.constant 0 : index
    %45 = vector.load %arg7[%c0_16, %c0_17] : memref<1x512xi32, #tpu.memory_space<vmem>>, vector<1x512xi32>
    tpu.vector_store %arg7[%c0_16, %c0_17], %44 {strides = array<i32>} : memref<1x512xi32, #tpu.memory_space<vmem>>, vector<1x512xi32>,
    %c0_18 = arith.constant 0 : index
    %c0_19 = arith.constant 0 : index
    %46 = vector.load %arg5[%c0_18, %c0_19] : memref<1x1xf32, #tpu.memory_space<vmem>>, vector<1x1xf32>
    %47 = arith.mulf %38, %34 : vector<1x512xf32>
    %cst_20 = arith.constant dense<0.000000e+00> : vector<1xf32>
    %48 = vector.multi_reduction <add>, %47, %cst_20 [1] : vector<1x512xf32> to vector<1xf32>
    %49 = vector.shape_cast %48 : vector<1xf32> to vector<1x1xf32>
    %50 = arith.addf %46, %49 : vector<1x1xf32>
    %c0_21 = arith.constant 0 : index
    %c0_22 = arith.constant 0 : index
    %51 = vector.load %arg5[%c0_21, %c0_22] : memref<1x1xf32, #tpu.memory_space<vmem>>, vector<1x1xf32>
    tpu.vector_store %arg5[%c0_21, %c0_22], %50 {strides = array<i32>} : memref<1x1xf32, #tpu.memory_space<vmem>>, vector<1x1xf32>,
    %c0_23 = arith.constant 0 : index
    %c0_24 = arith.constant 0 : index
    %52 = vector.load %arg6[%c0_23, %c0_24] : memref<1x1xf32, #tpu.memory_space<vmem>>, vector<1x1xf32>
    %53 = arith.cmpi eq, %44, %20 : vector<1x512xi32>
    %54 = arith.extui %53 : vector<1x512xi1> to vector<1x512xi32>
    %55 = arith.sitofp %54 : vector<1x512xi32> to vector<1x512xf32>
    %56 = arith.mulf %38, %55 : vector<1x512xf32>
    %cst_25 = arith.constant dense<0.000000e+00> : vector<1xf32>
    %57 = vector.multi_reduction <add>, %56, %cst_25 [1] : vector<1x512xf32> to vector<1xf32>
    %58 = vector.shape_cast %57 : vector<1xf32> to vector<1x1xf32>
    %59 = arith.addf %52, %58 : vector<1x1xf32>
    %c0_26 = arith.constant 0 : index
    %c0_27 = arith.constant 0 : index
    %60 = vector.load %arg6[%c0_26, %c0_27] : memref<1x1xf32, #tpu.memory_space<vmem>>, vector<1x1xf32>
    tpu.vector_store %arg6[%c0_26, %c0_27], %59 {strides = array<i32>} : memref<1x1xf32, #tpu.memory_space<vmem>>, vector<1x1xf32>,
    return
  }
  func.func @transform_0(%arg0: i32) -> (i32, i32) {
    %c0_i32 = arith.constant 0 : i32
    %c0_i32_0 = arith.constant 0 : i32
    return %arg0, %c0_i32 : i32, i32
  }
  func.func @transform_1(%arg0: i32) -> (i32, i32) {
    %c0_i32 = arith.constant 0 : i32
    %c0_i32_0 = arith.constant 0 : i32
    %c0_i32_1 = arith.constant 0 : i32
    return %c0_i32, %c0_i32_0 : i32, i32
  }
  func.func @transform_2(%arg0: i32) -> (i32, i32) {
    %c0_i32 = arith.constant 0 : i32
    %c0_i32_0 = arith.constant 0 : i32
    %c0_i32_1 = arith.constant 0 : i32
    return %c0_i32, %c0_i32_0 : i32, i32
  }
  func.func @transform_3(%arg0: i32) -> (i32, i32) {
    %c0_i32 = arith.constant 0 : i32
    %c0_i32_0 = arith.constant 0 : i32
    return %c0_i32, %arg0 : i32, i32
  }
  func.func @transform_4(%arg0: i32) -> (i32, i32) {
    %c0_i32 = arith.constant 0 : i32
    %c0_i32_0 = arith.constant 0 : i32
    %c0_i32_1 = arith.constant 0 : i32
    return %c0_i32, %c0_i32_0 : i32, i32
  }
  func.func @transform_5(%arg0: i32) -> (i32, i32) {
    %c0_i32 = arith.constant 0 : i32
    %c0_i32_0 = arith.constant 0 : i32
    %c0_i32_1 = arith.constant 0 : i32
    return %c0_i32, %c0_i32_0 : i32, i32
  }
  func.func @transform_6(%arg0: i32) -> (i32, i32) {
    %c0_i32 = arith.constant 0 : i32
    %c0_i32_0 = arith.constant 0 : i32
    return %c0_i32, %arg0 : i32, i32
  }
}

</mosaic_0001>

<llo_original>
// kernel: squeeze.5
$region0: #{squeeze.5}
  %s0 = inlined_call_operand.vmem [shape: s32[64], index: 0, kind: input, shape index: {}]
  %s1 = inlined_call_operand.vmem [shape: s32[8,8], index: 1, kind: output, shape index: {}]
  $region1: #{squeeze.5} parent=0
    #allocation0 [shape = 'u8[4096]{0}', space=vmem, size = 0x1000, scoped, tag = 'scoped mem for input reshape']
    %s3 = sshllo.u32 0, 1
    %v4 = vld [vmem:[%s0] sm:%s3]
    %5 = vst [vmem:[#allocation0] sm:%s3] %v4
    %v6 = vld [vmem:[#allocation0] sm:$0x1]
    %vm7 = vcmask 64512
    %8 = vst.msk [vmem:[%s1] sm:$0x1] %vm7, %v6
    %v9 = vld [vmem:[#allocation0] sm:$0x1]
    %10 = vrot.lane.b32.xlu0 %v9, 120
    %v11 = vpop.permute.xlu0 %10
    %vm12 = vcmask 64512
    %s13 = scalar_lea.vmem %s1, 1
    %14 = vst.msk [vmem:[%s13] sm:$0x1] %vm12, %v11
    %v15 = vld [vmem:[#allocation0] sm:$0x1]
    %16 = vrot.lane.b32.xlu0 %v15, 112
    %v17 = vpop.permute.xlu0 %16
    %vm18 = vcmask 64512
    %s19 = scalar_lea.vmem %s1, 2
    %20 = vst.msk [vmem:[%s19] sm:$0x1] %vm18, %v17
    %v21 = vld [vmem:[#allocation0] sm:$0x1]
    %22 = vrot.lane.b32.xlu0 %v21, 104
    %v23 = vpop.permute.xlu0 %22
    %vm24 = vcmask 64512
    %s25 = scalar_lea.vmem %s1, 3
    %26 = vst.msk [vmem:[%s25] sm:$0x1] %vm24, %v23
    %v27 = vld [vmem:[#allocation0] sm:$0x1]
    %28 = vrot.lane.b32.xlu0 %v27, 96
    %v29 = vpop.permute.xlu0 %28
    %vm30 = vcmask 64512
    %s31 = scalar_lea.vmem %s1, 4
    %32 = vst.msk [vmem:[%s31] sm:$0x1] %vm30, %v29
    %v33 = vld [vmem:[#allocation0] sm:$0x1]
    %34 = vrot.lane.b32.xlu0 %v33, 88
    %v35 = vpop.permute.xlu0 %34
    %vm36 = vcmask 64512
    %s37 = scalar_lea.vmem %s1, 5
    %38 = vst.msk [vmem:[%s37] sm:$0x1] %vm36, %v35
    %v39 = vld [vmem:[#allocation0] sm:$0x1]
    %40 = vrot.lane.b32.xlu0 %v39, 80
    %v41 = vpop.permute.xlu0 %40
    %vm42 = vcmask 64512
    %s43 = scalar_lea.vmem %s1, 6
    %44 = vst.msk [vmem:[%s43] sm:$0x1] %vm42, %v41
    %v45 = vld [vmem:[#allocation0] sm:$0x1]
    %46 = vrot.lane.b32.xlu0 %v45, 72
    %v47 = vpop.permute.xlu0 %46
    %vm48 = vcmask 64512
    %s49 = scalar_lea.vmem %s1, 7
    %50 = vst.msk [vmem:[%s49] sm:$0x1] %vm48, %v47

// kernel: only_lstm_forward.2
$region0: #{only_lstm_forward.2}
  #allocation0 [shape = 'u32[]', space=smem, size = 0x4, offset = 0x4, fixed_abs, tag = 'smem constant byte address 0x4 - core index']
  #allocation1 [shape = 'u32[144,128]{1,0:T(1,128)}', space=vmem, size = 0x12000, scoped, tag = 'internal scratch']
  #allocation2 [shape = 'f32[64,128]{1,0:T(8,128)}', space=vmem, size = 0x8000, scoped, tag = 'scratch operand']
  %s0 = inlined_call_operand.vmem [shape: f32[64,32], index: 0, kind: input, shape index: {}]
  %s1 = inlined_call_operand.vmem [shape: f32[32,128], index: 1, kind: input, shape index: {}]
  %s2 = inlined_call_operand.vmem [shape: f32[16,64], index: 2, kind: input, shape index: {}]
  %s3 = inlined_call_operand.vmem [shape: f32[16,64], index: 3, kind: input, shape index: {}]
  %s4 = inlined_call_operand.vmem [shape: f32[1,128], index: 4, kind: input, shape index: {}]
  %s5 = inlined_call_operand.vmem [shape: f32[512,32], index: 5, kind: output, shape index: {}]
  %s6 = sld [smem:[#allocation0]]
  $region37: #{only_lstm_forward.2} parent=0
    _
  %s8 = ssub.s32 1, %s6
  %s9 = scalar_select 0, %s8, %s6
  // Predicated region
  $region2: #{only_lstm_forward.2} parent=0 // pred_check
    _
  $region3: #{only_lstm_forward.2} parent=0 // pred_check_branch
    %11 = sbr.rel (0) target = $region5
  $region4: #{only_lstm_forward.2} parent=0 // pred_region
    _
  $region5: #{only_lstm_forward.2} parent=0 // pred_fallthru
    _
  // Predicated region
  $region6: #{only_lstm_forward.2} parent=0 // pred_check
    _
  $region7: #{only_lstm_forward.2} parent=0 // pred_check_branch
    %13 = sbr.rel (0) target = $region9
  $region8: #{only_lstm_forward.2} parent=0 // pred_region
    _
  $region9: #{only_lstm_forward.2} parent=0 // pred_fallthru
    _
  // Predicated region
  $region10: #{only_lstm_forward.2} parent=0 // pred_check
    _
  $region11: #{only_lstm_forward.2} parent=0 // pred_check_branch
    %15 = sbr.rel (0) target = $region13
  $region12: #{only_lstm_forward.2} parent=0 // pred_region
    _
  $region13: #{only_lstm_forward.2} parent=0 // pred_fallthru
    _
  // Predicated region
  $region14: #{only_lstm_forward.2} parent=0 // pred_check
    _
  $region15: #{only_lstm_forward.2} parent=0 // pred_check_branch
    %17 = sbr.rel (0) target = $region17
  $region16: #{only_lstm_forward.2} parent=0 // pred_region
    _
  $region17: #{only_lstm_forward.2} parent=0 // pred_fallthru
    _
  // Predicated region
  $region18: #{only_lstm_forward.2} parent=0 // pred_check
    _
  $region19: #{only_lstm_forward.2} parent=0 // pred_check_branch
    %19 = sbr.rel (0) target = $region21
  $region20: #{only_lstm_forward.2} parent=0 // pred_region
    _
  $region21: #{only_lstm_forward.2} parent=0 // pred_fallthru
    _
  %vm20 = vcmask 261120
  %21 = vst.msk [vmem:[%s5] sm:$0xff] %vm20, 0.0
  %22 = vst.msk [vmem:[%s5 + $0x8] sm:$0xff] %vm20, 0.0
  %23 = vst.msk [vmem:[%s5 + $0x10] sm:$0xff] %vm20, 0.0
  %24 = vst.msk [vmem:[%s5 + $0x18] sm:$0xff] %vm20, 0.0
  %25 = vst.msk [vmem:[%s5 + $0x20] sm:$0xff] %vm20, 0.0
  %26 = vst.msk [vmem:[%s5 + $0x28] sm:$0xff] %vm20, 0.0
  %27 = vst.msk [vmem:[%s5 + $0x30] sm:$0xff] %vm20, 0.0
  %28 = vst.msk [vmem:[%s5 + $0x38] sm:$0xff] %vm20, 0.0
  %29 = vst.msk [vmem:[%s5 + $0x40] sm:$0xff] %vm20, 0.0
  %30 = vst.msk [vmem:[%s5 + $0x48] sm:$0xff] %vm20, 0.0
  %31 = vst.msk [vmem:[%s5 + $0x50] sm:$0xff] %vm20, 0.0
  %32 = vst.msk [vmem:[%s5 + $0x58] sm:$0xff] %vm20, 0.0
  %33 = vst.msk [vmem:[%s5 + $0x60] sm:$0xff] %vm20, 0.0
  %34 = vst.msk [vmem:[%s5 + $0x68] sm:$0xff] %vm20, 0.0
  %35 = vst.msk [vmem:[%s5 + $0x70] sm:$0xff] %vm20, 0.0
  %36 = vst.msk [vmem:[%s5 + $0x78] sm:$0xff] %vm20, 0.0
  %37 = vst.msk [vmem:[%s5 + $0x80] sm:$0xff] %vm20, 0.0
  %38 = vst.msk [vmem:[%s5 + $0x88] sm:$0xff] %vm20, 0.0
  %39 = vst.msk [vmem:[%s5 + $0x90] sm:$0xff] %vm20, 0.0
  %40 = vst.msk [vmem:[%s5 + $0x98] sm:$0xff] %vm20, 0.0
  %41 = vst.msk [vmem:[%s5 + $0xa0] sm:$0xff] %vm20, 0.0
  %42 = vst.msk [vmem:[%s5 + $0xa8] sm:$0xff] %vm20, 0.0
  %43 = vst.msk [vmem:[%s5 + $0xb0] sm:$0xff] %vm20, 0.0
  %44 = vst.msk [vmem:[%s5 + $0xb8] sm:$0xff] %vm20, 0.0
  %45 = vst.msk [vmem:[%s5 + $0xc0] sm:$0xff] %vm20, 0.0
  %46 = vst.msk [vmem:[%s5 + $0xc8] sm:$0xff] %vm20, 0.0
  %47 = vst.msk [vmem:[%s5 + $0xd0] sm:$0xff] %vm20, 0.0
  %48 = vst.msk [vmem:[%s5 + $0xd8] sm:$0xff] %vm20, 0.0
  %49 = vst.msk [vmem:[%s5 + $0xe0] sm:$0xff] %vm20, 0.0
  %50 = vst.msk [vmem:[%s5 + $0xe8] sm:$0xff] %vm20, 0.0
  %51 = vst.msk [vmem:[%s5 + $0xf0] sm:$0xff] %vm20, 0.0
  %52 = vst.msk [vmem:[%s5 + $0xf8] sm:$0xff] %vm20, 0.0
  %53 = vst.msk [vmem:[%s5 + $0x100] sm:$0xff] %vm20, 0.0
  %54 = vst.msk [vmem:[%s5 + $0x108] sm:$0xff] %vm20, 0.0
  %55 = vst.msk [vmem:[%s5 + $0x110] sm:$0xff] %vm20, 0.0
  %56 = vst.msk [vmem:[%s5 + $0x118] sm:$0xff] %vm20, 0.0
  %57 = vst.msk [vmem:[%s5 + $0x120] sm:$0xff] %vm20, 0.0
  %58 = vst.msk [vmem:[%s5 + $0x128] sm:$0xff] %vm20, 0.0
  %59 = vst.msk [vmem:[%s5 + $0x130] sm:$0xff] %vm20, 0.0
  %60 = vst.msk [vmem:[%s5 + $0x138] sm:$0xff] %vm20, 0.0
  %61 = vst.msk [vmem:[%s5 + $0x140] sm:$0xff] %vm20, 0.0
  %62 = vst.msk [vmem:[%s5 + $0x148] sm:$0xff] %vm20, 0.0
  %63 = vst.msk [vmem:[%s5 + $0x150] sm:$0xff] %vm20, 0.0
  %64 = vst.msk [vmem:[%s5 + $0x158] sm:$0xff] %vm20, 0.0
  %65 = vst.msk [vmem:[%s5 + $0x160] sm:$0xff] %vm20, 0.0
  %66 = vst.msk [vmem:[%s5 + $0x168] sm:$0xff] %vm20, 0.0
  %67 = vst.msk [vmem:[%s5 + $0x170] sm:$0xff] %vm20, 0.0
  %68 = vst.msk [vmem:[%s5 + $0x178] sm:$0xff] %vm20, 0.0
  %69 = vst.msk [vmem:[%s5 + $0x180] sm:$0xff] %vm20, 0.0
  %70 = vst.msk [vmem:[%s5 + $0x188] sm:$0xff] %vm20, 0.0
  %71 = vst.msk [vmem:[%s5 + $0x190] sm:$0xff] %vm20, 0.0
  %72 = vst.msk [vmem:[%s5 + $0x198] sm:$0xff] %vm20, 0.0
  %73 = vst.msk [vmem:[%s5 + $0x1a0] sm:$0xff] %vm20, 0.0
  %74 = vst.msk [vmem:[%s5 + $0x1a8] sm:$0xff] %vm20, 0.0
  %75 = vst.msk [vmem:[%s5 + $0x1b0] sm:$0xff] %vm20, 0.0
  %76 = vst.msk [vmem:[%s5 + $0x1b8] sm:$0xff] %vm20, 0.0
  %77 = vst.msk [vmem:[%s5 + $0x1c0] sm:$0xff] %vm20, 0.0
  %78 = vst.msk [vmem:[%s5 + $0x1c8] sm:$0xff] %vm20, 0.0
  %79 = vst.msk [vmem:[%s5 + $0x1d0] sm:$0xff] %vm20, 0.0
  %80 = vst.msk [vmem:[%s5 + $0x1d8] sm:$0xff] %vm20, 0.0
  %81 = vst.msk [vmem:[%s5 + $0x1e0] sm:$0xff] %vm20, 0.0
  %82 = vst.msk [vmem:[%s5 + $0x1e8] sm:$0xff] %vm20, 0.0
  %83 = vst.msk [vmem:[%s5 + $0x1f0] sm:$0xff] %vm20, 0.0
  %84 = vst.msk [vmem:[%s5 + $0x1f8] sm:$0xff] %vm20, 0.0
  %v85 = vld [vmem:[%s0] sm:$0xff]
  %v86 = vld [vmem:[%s0 + $0x8] sm:$0xff]
  %v87 = vld [vmem:[%s0 + $0x10] sm:$0xff]
  %v88 = vld [vmem:[%s0 + $0x18] sm:$0xff]
  %v89 = vld [vmem:[%s0 + $0x20] sm:$0xff]
  %v90 = vld [vmem:[%s0 + $0x28] sm:$0xff]
  %v91 = vld [vmem:[%s0 + $0x30] sm:$0xff]
  %v92 = vld [vmem:[%s0 + $0x38] sm:$0xff]
  %v93 = vld [vmem:[%s1] sm:$0xff]
  %v94 = vld [vmem:[%s1 + $0x8] sm:$0xff]
  %v95 = vld [vmem:[%s1 + $0x10] sm:$0xff]
  %v96 = vld [vmem:[%s1 + $0x18] sm:$0xff]
  %v97 = vld [vmem:[%s4] sm:$0x1]
  %v99 = vlaneseq
  %v100 = vshrl.u32 %v99, 7
  %v101 = vsub.s32 0, %v100
  %v102 = vrot.slane %v97, %v101
  %v105 = vsel %vm20, %v85, 0
  %v108 = vsel %vm20, %v86, 0
  %v111 = vsel %vm20, %v87, 0
  %v114 = vsel %vm20, %v88, 0
  %v117 = vsel %vm20, %v89, 0
  %v120 = vsel %vm20, %v90, 0
  %v123 = vsel %vm20, %v91, 0
  %v126 = vsel %vm20, %v92, 0
  %128 = vmatprep.subr.mxu0 0.0
  %129 = vmatpush1.msra.mxu0 %v93
  %130 = vmatprep.subr.mxu0 0.0
  %131 = vmatpush1.msra.mxu0 %v94
  %132 = vmatprep.subr.mxu0 0.0
  %133 = vmatpush1.msra.mxu0 %v95
  %134 = vmatprep.subr.mxu0 0.0
  %135 = vmatpush1.msra.mxu0 %v96
  %136 = vmatprep.subr.mxu0 0.0
  %137 = vmatpush1.msra.mxu0 0.0
  %138 = vmatprep.subr.mxu0 0.0
  %139 = vmatpush1.msra.mxu0 0.0
  %140 = vmatprep.subr.mxu0 0.0
  %141 = vmatpush1.msra.mxu0 0.0
  %142 = vmatprep.subr.mxu0 0.0
  %143 = vmatpush1.msra.mxu0 0.0
  %144 = vmatprep.subr.mxu0 0.0
  %145 = vmatpush1.msra.mxu0 0.0
  %146 = vmatprep.subr.mxu0 0.0
  %147 = vmatpush1.msra.mxu0 0.0
  %148 = vmatprep.subr.mxu0 0.0
  %149 = vmatpush1.msra.mxu0 0.0
  %150 = vmatprep.subr.mxu0 0.0
  %151 = vmatpush1.msra.mxu0 0.0
  %152 = vmatprep.subr.mxu0 0.0
  %153 = vmatpush1.msra.mxu0 0.0
  %154 = vmatprep.subr.mxu0 0.0
  %155 = vmatpush1.msra.mxu0 0.0
  %156 = vmatprep.subr.mxu0 0.0
  %157 = vmatpush1.msra.mxu0 0.0
  %158 = vmatprep.subr.mxu0 0.0
  %159 = vmatpush1.msra.mxu0 0.0
  %160 = vmatprep.subr.mxu0 0.0
  %161 = vmatpush1.msra.mxu0 0.0
  %162 = vmatprep.subr.mxu0 0.0
  %163 = vmatpush1.msra.mxu0 0.0
  %164 = vmatprep.subr.mxu0 0.0
  %165 = vmatpush1.msra.mxu0 0.0
  %166 = vmatprep.subr.mxu0 0.0
  %167 = vmatpush1.msra.mxu0 0.0
  %168 = vmatprep.subr.mxu0 0.0
  %169 = vmatpush1.msra.mxu0 0.0
  %170 = vmatprep.subr.mxu0 0.0
  %171 = vmatpush1.msra.mxu0 0.0
  %172 = vmatprep.subr.mxu0 0.0
  %173 = vmatpush1.msra.mxu0 0.0
  %174 = vmatprep.subr.mxu0 0.0
  %175 = vmatpush1.msra.mxu0 0.0
  %176 = vmatprep.subr.mxu0 0.0
  %177 = vmatpush1.msra.mxu0 0.0
  %178 = vmatprep.subr.mxu0 0.0
  %179 = vmatpush1.msra.mxu0 0.0
  %180 = vmatprep.subr.mxu0 0.0
  %181 = vmatpush1.msra.mxu0 0.0
  %182 = vmatprep.subr.mxu0 0.0
  %183 = vmatpush1.msra.mxu0 0.0
  %184 = vmatprep.subr.mxu0 0.0
  %185 = vmatpush1.msra.mxu0 0.0
  %186 = vmatprep.subr.mxu0 0.0
  %187 = vmatpush1.msra.mxu0 0.0
  %188 = vmatprep.subr.mxu0 0.0
  %189 = vmatpush1.msra.mxu0 0.0
  %190 = vmatprep.subr.mxu0 0.0
  %191 = vmatpush1.msra.mxu0 0.0
  %192 = vmatprep.mubr.f32.mxu0 0.0
  %193 = vmatmul.mubr.f32.gmra.mrb[0].mxu0 %v105
  %v194 = vpop.f32.mrb[0].mxu0
  %v195 = vadd.f32 %v102, %v194
  %v196 = vpop.f32.mrb[0].mxu0
  %197 = vmatprep.mubr.f32.mxu0 0.0
  %198 = vmatmul.mubr.f32.gmra.mrb[0].mxu0 %v108
  %v199 = vpop.f32.mrb[0].mxu0
  %v200 = vadd.f32 %v102, %v199
  %v201 = vpop.f32.mrb[0].mxu0
  %202 = vmatprep.mubr.f32.mxu0 0.0
  %203 = vmatmul.mubr.f32.gmra.mrb[0].mxu0 %v111
  %v204 = vpop.f32.mrb[0].mxu0
  %v205 = vadd.f32 %v102, %v204
  %v206 = vpop.f32.mrb[0].mxu0
  %207 = vmatprep.mubr.f32.mxu0 0.0
  %208 = vmatmul.mubr.f32.gmra.mrb[0].mxu0 %v114
  %v209 = vpop.f32.mrb[0].mxu0
  %v210 = vadd.f32 %v102, %v209
  %v211 = vpop.f32.mrb[0].mxu0
  %212 = vmatprep.mubr.f32.mxu0 0.0
  %213 = vmatmul.mubr.f32.gmra.mrb[0].mxu0 %v117
  %v214 = vpop.f32.mrb[0].mxu0
  %v215 = vadd.f32 %v102, %v214
  %v216 = vpop.f32.mrb[0].mxu0
  %217 = vmatprep.mubr.f32.mxu0 0.0
  %218 = vmatmul.mubr.f32.gmra.mrb[0].mxu0 %v120
  %v219 = vpop.f32.mrb[0].mxu0
  %v220 = vadd.f32 %v102, %v219
  %v221 = vpop.f32.mrb[0].mxu0
  %222 = vmatprep.mubr.f32.mxu0 0.0
  %223 = vmatmul.mubr.f32.gmra.mrb[0].mxu0 %v123
  %v224 = vpop.f32.mrb[0].mxu0
  %v225 = vadd.f32 %v102, %v224
  %v226 = vpop.f32.mrb[0].mxu0
  %227 = vmatprep.mubr.f32.mxu0 0.0
  %228 = vmatmul.mubr.f32.gmra.mrb[0].mxu0 %v126
  %v229 = vpop.f32.mrb[0].mxu0
  %v230 = vadd.f32 %v102, %v229
  %v231 = vpop.f32.mrb[0].mxu0
  %232 = vdwg.mxu0
  %233 = vst [vmem:[#allocation2] sm:$0xff] %v195
  %234 = vst [vmem:[#allocation2 + $0x8] sm:$0xff] %v200
  %235 = vst [vmem:[#allocation2 + $0x10] sm:$0xff] %v205
  %236 = vst [vmem:[#allocation2 + $0x18] sm:$0xff] %v210
  %237 = vst [vmem:[#allocation2 + $0x20] sm:$0xff] %v215
  %238 = vst [vmem:[#allocation2 + $0x28] sm:$0xff] %v220
  %239 = vst [vmem:[#allocation2 + $0x30] sm:$0xff] %v225
  %240 = vst [vmem:[#allocation2 + $0x38] sm:$0xff] %v230
  loop: start=0, step=1, limit=8
  $region22: #{only_lstm_forward.2} parent=0 // loop_pre_header
    _
  $region23: #{only_lstm_forward.2} parent=0 // loop_header
    %s242 = sphi 0, %s246
    %p243 = scmp.ge.s32.totalorder %s242, 8
    %v247 = vphi 0.0, %v442
    %v248 = vphi 0.0, %v436
    %v249 = vphi 0.0, %v466
    %v250 = vphi 0.0, %v460
  $region24: #{only_lstm_forward.2} parent=0 // loop_header_branch
    %245 = sbr.rel (%p243) target = $region28
  $region25: #{only_lstm_forward.2} parent=0 // loop_body
    %s251 = smul.u32 %s242, 8
    %s252 = ssub.s32 7, %s242
    %s253 = smul.u32 %s252, 8
    %s254 = scalar_lea.vmem [#allocation2], %s251
    %v255 = vld [vmem:[%s254] sm:$0xff]
    %v256 = vld [vmem:[%s2] sm:$0xff]
    %v257 = vld [vmem:[%s2 + $0x8] sm:$0xff]
    %259 = vrot.lane.b32.xlu0 %v247, 96
    %v260 = vpop.permute.xlu0 %259
    %vm261 = vcmask 130048
    %v262 = vsel %vm261, %v260, 0
    %264 = vmatprep.subr.mxu0 0.0
    %265 = vmatpush1.msra.mxu0 %v256
    %266 = vmatprep.subr.mxu0 0.0
    %267 = vmatpush1.msra.mxu0 %v257
    %268 = vmatprep.subr.mxu0 0.0
    %269 = vmatpush1.msra.mxu0 0.0
    %270 = vmatprep.subr.mxu0 0.0
    %271 = vmatpush1.msra.mxu0 0.0
    %272 = vmatprep.subr.mxu0 0.0
    %273 = vmatpush1.msra.mxu0 0.0
    %274 = vmatprep.subr.mxu0 0.0
    %275 = vmatpush1.msra.mxu0 0.0
    %276 = vmatprep.subr.mxu0 0.0
    %277 = vmatpush1.msra.mxu0 0.0
    %278 = vmatprep.subr.mxu0 0.0
    %279 = vmatpush1.msra.mxu0 0.0
    %280 = vmatprep.subr.mxu0 0.0
    %281 = vmatpush1.msra.mxu0 0.0
    %282 = vmatprep.subr.mxu0 0.0
    %283 = vmatpush1.msra.mxu0 0.0
    %284 = vmatprep.subr.mxu0 0.0
    %285 = vmatpush1.msra.mxu0 0.0
    %286 = vmatprep.subr.mxu0 0.0
    %287 = vmatpush1.msra.mxu0 0.0
    %288 = vmatprep.subr.mxu0 0.0
    %289 = vmatpush1.msra.mxu0 0.0
    %290 = vmatprep.subr.mxu0 0.0
    %291 = vmatpush1.msra.mxu0 0.0
    %292 = vmatprep.subr.mxu0 0.0
    %293 = vmatpush1.msra.mxu0 0.0
    %294 = vmatprep.subr.mxu0 0.0
    %295 = vmatpush1.msra.mxu0 0.0
    %296 = vmatprep.subr.mxu0 0.0
    %297 = vmatpush1.msra.mxu0 0.0
    %298 = vmatprep.subr.mxu0 0.0
    %299 = vmatpush1.msra.mxu0 0.0
    %300 = vmatprep.subr.mxu0 0.0
    %301 = vmatpush1.msra.mxu0 0.0
    %302 = vmatprep.subr.mxu0 0.0
    %303 = vmatpush1.msra.mxu0 0.0
    %304 = vmatprep.subr.mxu0 0.0
    %305 = vmatpush1.msra.mxu0 0.0
    %306 = vmatprep.subr.mxu0 0.0
    %307 = vmatpush1.msra.mxu0 0.0
    %308 = vmatprep.subr.mxu0 0.0
    %309 = vmatpush1.msra.mxu0 0.0
    %310 = vmatprep.subr.mxu0 0.0
    %311 = vmatpush1.msra.mxu0 0.0
    %312 = vmatprep.subr.mxu0 0.0
    %313 = vmatpush1.msra.mxu0 0.0
    %314 = vmatprep.subr.mxu0 0.0
    %315 = vmatpush1.msra.mxu0 0.0
    %316 = vmatprep.subr.mxu0 0.0
    %317 = vmatpush1.msra.mxu0 0.0
    %318 = vmatprep.subr.mxu0 0.0
    %319 = vmatpush1.msra.mxu0 0.0
    %320 = vmatprep.subr.mxu0 0.0
    %321 = vmatpush1.msra.mxu0 0.0
    %322 = vmatprep.subr.mxu0 0.0
    %323 = vmatpush1.msra.mxu0 0.0
    %324 = vmatprep.subr.mxu0 0.0
    %325 = vmatpush1.msra.mxu0 0.0
    %326 = vmatprep.subr.mxu0 0.0
    %327 = vmatpush1.msra.mxu0 0.0
    %328 = vmatprep.mubr.f32.mxu0 0.0
    %329 = vmatmul.mubr.f32.gmra.mrb[0].mxu0 %v262
    %v330 = vpop.f32.mrb[0].mxu0
    %v331 = vadd.f32 0.0, %v330
    %v332 = vpop.f32.mrb[0].mxu0
    %333 = vdwg.mxu0
    %v334 = vadd.f32 %v255, %v331
    %s335 = scalar_lea.vmem [#allocation2], %s253
    %v336 = vld [vmem:[%s335] sm:$0xff]
    %v337 = vld [vmem:[%s3] sm:$0xff]
    %v338 = vld [vmem:[%s3 + $0x8] sm:$0xff]
    %340 = vrot.lane.b32.xlu0 %v249, 32
    %v341 = vpop.permute.xlu0 %340
    %v342 = vsel %vm261, %v341, 0
    %344 = vmatprep.subr.mxu0 0.0
    %345 = vmatpush1.msra.mxu0 %v337
    %346 = vmatprep.subr.mxu0 0.0
    %347 = vmatpush1.msra.mxu0 %v338
    %348 = vmatprep.subr.mxu0 0.0
    %349 = vmatpush1.msra.mxu0 0.0
    %350 = vmatprep.subr.mxu0 0.0
    %351 = vmatpush1.msra.mxu0 0.0
    %352 = vmatprep.subr.mxu0 0.0
    %353 = vmatpush1.msra.mxu0 0.0
    %354 = vmatprep.subr.mxu0 0.0
    %355 = vmatpush1.msra.mxu0 0.0
    %356 = vmatprep.subr.mxu0 0.0
    %357 = vmatpush1.msra.mxu0 0.0
    %358 = vmatprep.subr.mxu0 0.0
    %359 = vmatpush1.msra.mxu0 0.0
    %360 = vmatprep.subr.mxu0 0.0
    %361 = vmatpush1.msra.mxu0 0.0
    %362 = vmatprep.subr.mxu0 0.0
    %363 = vmatpush1.msra.mxu0 0.0
    %364 = vmatprep.subr.mxu0 0.0
    %365 = vmatpush1.msra.mxu0 0.0
    %366 = vmatprep.subr.mxu0 0.0
    %367 = vmatpush1.msra.mxu0 0.0
    %368 = vmatprep.subr.mxu0 0.0
    %369 = vmatpush1.msra.mxu0 0.0
    %370 = vmatprep.subr.mxu0 0.0
    %371 = vmatpush1.msra.mxu0 0.0
    %372 = vmatprep.subr.mxu0 0.0
    %373 = vmatpush1.msra.mxu0 0.0
    %374 = vmatprep.subr.mxu0 0.0
    %375 = vmatpush1.msra.mxu0 0.0
    %376 = vmatprep.subr.mxu0 0.0
    %377 = vmatpush1.msra.mxu0 0.0
    %378 = vmatprep.subr.mxu0 0.0
    %379 = vmatpush1.msra.mxu0 0.0
    %380 = vmatprep.subr.mxu0 0.0
    %381 = vmatpush1.msra.mxu0 0.0
    %382 = vmatprep.subr.mxu0 0.0
    %383 = vmatpush1.msra.mxu0 0.0
    %384 = vmatprep.subr.mxu0 0.0
    %385 = vmatpush1.msra.mxu0 0.0
    %386 = vmatprep.subr.mxu0 0.0
    %387 = vmatpush1.msra.mxu0 0.0
    %388 = vmatprep.subr.mxu0 0.0
    %389 = vmatpush1.msra.mxu0 0.0
    %390 = vmatprep.subr.mxu0 0.0
    %391 = vmatpush1.msra.mxu0 0.0
    %392 = vmatprep.subr.mxu0 0.0
    %393 = vmatpush1.msra.mxu0 0.0
    %394 = vmatprep.subr.mxu0 0.0
    %395 = vmatpush1.msra.mxu0 0.0
    %396 = vmatprep.subr.mxu0 0.0
    %397 = vmatpush1.msra.mxu0 0.0
    %398 = vmatprep.subr.mxu0 0.0
    %399 = vmatpush1.msra.mxu0 0.0
    %400 = vmatprep.subr.mxu0 0.0
    %401 = vmatpush1.msra.mxu0 0.0
    %402 = vmatprep.subr.mxu0 0.0
    %403 = vmatpush1.msra.mxu0 0.0
    %404 = vmatprep.subr.mxu0 0.0
    %405 = vmatpush1.msra.mxu0 0.0
    %406 = vmatprep.subr.mxu0 0.0
    %407 = vmatpush1.msra.mxu0 0.0
    %408 = vmatprep.mubr.f32.mxu0 0.0
    %409 = vmatmul.mubr.f32.gmra.mrb[0].mxu0 %v342
    %v410 = vpop.f32.mrb[0].mxu0
    %v411 = vadd.f32 0.0, %v410
    %v412 = vpop.f32.mrb[0].mxu0
    %413 = vdwg.mxu0
    %415 = vrot.lane.b32.xlu0 %v411, 64
    %v416 = vpop.permute.xlu0 %415
    %v418 = vadd.f32 %v336, %v416
    %v419 = vxor.u32 %v334, 2147483648
    %v420 = vmul.f32 %v419, 1.442695
    %v421 = vpow.pop %v420
    %v422 = vadd.f32 %v421, 1.0
    %v423 = vrcp.pop %v422
    %v424 = vmul.f32 1.0, %v423
    %v425 = vtanh.pop %v334
    %v426 = vmul.f32 %v424, %v248
    %428 = vrot.lane.b32.xlu0 %v425, 80
    %v429 = vpop.permute.xlu0 %428
    %v431 = vmul.f32 %v424, %v429
    %433 = vrot.lane.b32.xlu0 %v431, 16
    %v434 = vpop.permute.xlu0 %433
    %v436 = vadd.f32 %v426, %v434
    %v437 = vtanh.pop %v436
    %439 = vrot.lane.b32.xlu0 %v437, 16
    %v440 = vpop.permute.xlu0 %439
    %v442 = vmul.f32 %v424, %v440
    %v443 = vxor.u32 %v418, 2147483648
    %v444 = vmul.f32 %v443, 1.442695
    %v445 = vpow.pop %v444
    %v446 = vadd.f32 %v445, 1.0
    %v447 = vrcp.pop %v446
    %v448 = vmul.f32 1.0, %v447
    %v449 = vtanh.pop %v418
    %v450 = vmul.f32 %v448, %v250
    %452 = vrot.lane.b32.xlu0 %v449, 80
    %v453 = vpop.permute.xlu0 %452
    %v455 = vmul.f32 %v448, %v453
    %457 = vrot.lane.b32.xlu0 %v455, 16
    %v458 = vpop.permute.xlu0 %457
    %v460 = vadd.f32 %v450, %v458
    %v461 = vtanh.pop %v460
    %463 = vrot.lane.b32.xlu0 %v461, 16
    %v464 = vpop.permute.xlu0 %463
    %v466 = vmul.f32 %v448, %v464
    %468 = vrot.lane.b32.xlu0 %v442, 96
    %v469 = vpop.permute.xlu0 %468
    %s471 = scalar_lea.vmem %s5, %s251
    %472 = vst.msk [vmem:[%s471] sm:$0xff] %vm261, %v469
    %474 = vrot.lane.b32.xlu0 %v466, 48
    %v475 = vpop.permute.xlu0 %474
    %s477 = scalar_lea.vmem %s5, %s253
    %vm478 = vcmask 261248
    %479 = vst.msk [vmem:[%s477] sm:$0xff] %vm478, %v475
  $region26: #{only_lstm_forward.2} parent=0 // loop_footer
    %s246 = sadd.s32 1, %s242
  $region27: #{only_lstm_forward.2} parent=0 // loop_footer_branch
    %241 = sbr.rel target = $region23
  $region28: #{only_lstm_forward.2} parent=0 // loop_exit
    _
  // Predicated region
  $region29: #{only_lstm_forward.2} parent=0 // pred_check
    _
  $region30: #{only_lstm_forward.2} parent=0 // pred_check_branch
    %481 = sbr.rel (0) target = $region32
  $region31: #{only_lstm_forward.2} parent=0 // pred_region
    _
  $region32: #{only_lstm_forward.2} parent=0 // pred_fallthru
    _
  // Predicated region
  $region33: #{only_lstm_forward.2} parent=0 // pred_check
    _
  $region34: #{only_lstm_forward.2} parent=0 // pred_check_branch
    %483 = sbr.rel (0) target = $region36
  $region35: #{only_lstm_forward.2} parent=0 // pred_region
    _
  $region36: #{only_lstm_forward.2} parent=0 // pred_fallthru
    _

// kernel: only_lstm_forward.3
$region0: #{only_lstm_forward.3}
  #allocation0 [shape = 'u32[]', space=smem, size = 0x4, offset = 0x4, fixed_abs, tag = 'smem constant byte address 0x4 - core index']
  #allocation1 [shape = 'u32[144,128]{1,0:T(1,128)}', space=vmem, size = 0x12000, scoped, tag = 'internal scratch']
  %s0 = inlined_call_operand.vmem [shape: f32[512,32], index: 0, kind: input, shape index: {}]
  %s1 = inlined_call_operand.vmem [shape: f32[7,32], index: 1, kind: input, shape index: {}]
  %s2 = inlined_call_operand.vmem [shape: f32[7,1], index: 2, kind: input, shape index: {}]
  %s3 = inlined_call_operand.vmem [shape: s32[1,512], index: 3, kind: input, shape index: {}]
  %s4 = inlined_call_operand.hbm [shape: f32[1,1], index: 4, kind: output, shape index: {0}]
  %s5 = inlined_call_operand.hbm [shape: f32[1,1], index: 5, kind: output, shape index: {1}]
  %s6 = inlined_call_operand.vmem [shape: s32[1,512], index: 6, kind: output, shape index: {2}]
  %7 = xla_tuple %s4, %s5, %s6
  %s8 = sld [smem:[#allocation0]]
  $region46: #{only_lstm_forward.3} parent=0
    _
  %s10 = ssub.s32 1, %s8
  %s11 = scalar_select 0, %s10, %s8
  $region1: #{only_lstm_forward.3} parent=0
    #allocation2 [shape = 'u8[512]{0}', space=vmem, size = 0x400, scoped, tag = 'output window, operand 0, single buffered']
    #allocation3 [shape = 's32[1]{0}', space=sflag, size = 0x4, scoped, tag = 'scoped memory for only_lstm_forward.3']
    #allocation4 [shape = 'u8[512]{0}', space=vmem, size = 0x400, scoped, tag = 'output window, operand 1, single buffered']
    #allocation5 [shape = 's32[1]{0}', space=sflag, size = 0x4, scoped, tag = 'scoped memory for only_lstm_forward.3']
    %12 = vsyncpa [#allocation3], 0
    %13 = vsyncpa [#allocation5], 0
    // Predicated region
    $region2: #{only_lstm_forward.3} parent=1 // pred_check
      _
    $region3: #{only_lstm_forward.3} parent=1 // pred_check_branch
      %15 = sbr.rel (0) target = $region5
    $region4: #{only_lstm_forward.3} parent=1 // pred_region
      _
    $region5: #{only_lstm_forward.3} parent=1 // pred_fallthru
      _
    // Predicated region
    $region6: #{only_lstm_forward.3} parent=1 // pred_check
      _
    $region7: #{only_lstm_forward.3} parent=1 // pred_check_branch
      %17 = sbr.rel (0) target = $region9
    $region8: #{only_lstm_forward.3} parent=1 // pred_region
      _
    $region9: #{only_lstm_forward.3} parent=1 // pred_fallthru
      _
    // Predicated region
    $region10: #{only_lstm_forward.3} parent=1 // pred_check
      _
    $region11: #{only_lstm_forward.3} parent=1 // pred_check_branch
      %19 = sbr.rel (0) target = $region13
    $region12: #{only_lstm_forward.3} parent=1 // pred_region
      _
    $region13: #{only_lstm_forward.3} parent=1 // pred_fallthru
      _
    // Predicated region
    $region14: #{only_lstm_forward.3} parent=1 // pred_check
      _
    $region15: #{only_lstm_forward.3} parent=1 // pred_check_branch
      %21 = sbr.rel (0) target = $region17
    $region16: #{only_lstm_forward.3} parent=1 // pred_region
      _
    $region17: #{only_lstm_forward.3} parent=1 // pred_fallthru
      _
    %p22 = scmp.eq.s32.totalorder 0, 0
    // Predicated region
    $region18: #{only_lstm_forward.3} parent=1 // pred_check
      %p23 = pneg %p22
    $region19: #{only_lstm_forward.3} parent=1 // pred_check_branch
      %25 = sbr.rel (%p23) target = $region21
    $region20: #{only_lstm_forward.3} parent=1 // pred_region
      %vm26 = vcmask 0
      %27 = vst.msk [vmem:[#allocation2] sm:$0x1] %vm26, 0.0
      %28 = vst.msk [vmem:[#allocation4] sm:$0x1] %vm26, 0.0
    $region21: #{only_lstm_forward.3} parent=1 // pred_fallthru
      _
    %v29 = vld [vmem:[%s1] sm:$0x7f]
    %v30 = vld [vmem:[%s0] sm:$0xff]
    %v31 = vld [vmem:[%s0 + $0x8] sm:$0xff]
    %v32 = vld [vmem:[%s0 + $0x10] sm:$0xff]
    %v33 = vld [vmem:[%s0 + $0x18] sm:$0xff]
    %v34 = vld [vmem:[%s0 + $0x20] sm:$0xff]
    %v35 = vld [vmem:[%s0 + $0x28] sm:$0xff]
    %v36 = vld [vmem:[%s0 + $0x30] sm:$0xff]
    %v37 = vld [vmem:[%s0 + $0x38] sm:$0xff]
    %v38 = vld [vmem:[%s0 + $0x40] sm:$0xff]
    %v39 = vld [vmem:[%s0 + $0x48] sm:$0xff]
    %v40 = vld [vmem:[%s0 + $0x50] sm:$0xff]
    %v41 = vld [vmem:[%s0 + $0x58] sm:$0xff]
    %v42 = vld [vmem:[%s0 + $0x60] sm:$0xff]
    %v43 = vld [vmem:[%s0 + $0x68] sm:$0xff]
    %v44 = vld [vmem:[%s0 + $0x70] sm:$0xff]
    %v45 = vld [vmem:[%s0 + $0x78] sm:$0xff]
    %v46 = vld [vmem:[%s0 + $0x80] sm:$0xff]
    %v47 = vld [vmem:[%s0 + $0x88] sm:$0xff]
    %v48 = vld [vmem:[%s0 + $0x90] sm:$0xff]
    %v49 = vld [vmem:[%s0 + $0x98] sm:$0xff]
    %v50 = vld [vmem:[%s0 + $0xa0] sm:$0xff]
    %v51 = vld [vmem:[%s0 + $0xa8] sm:$0xff]
    %v52 = vld [vmem:[%s0 + $0xb0] sm:$0xff]
    %v53 = vld [vmem:[%s0 + $0xb8] sm:$0xff]
    %v54 = vld [vmem:[%s0 + $0xc0] sm:$0xff]
    %v55 = vld [vmem:[%s0 + $0xc8] sm:$0xff]
    %v56 = vld [vmem:[%s0 + $0xd0] sm:$0xff]
    %v57 = vld [vmem:[%s0 + $0xd8] sm:$0xff]
    %v58 = vld [vmem:[%s0 + $0xe0] sm:$0xff]
    %v59 = vld [vmem:[%s0 + $0xe8] sm:$0xff]
    %v60 = vld [vmem:[%s0 + $0xf0] sm:$0xff]
    %v61 = vld [vmem:[%s0 + $0xf8] sm:$0xff]
    %v62 = vld [vmem:[%s0 + $0x100] sm:$0xff]
    %v63 = vld [vmem:[%s0 + $0x108] sm:$0xff]
    %v64 = vld [vmem:[%s0 + $0x110] sm:$0xff]
    %v65 = vld [vmem:[%s0 + $0x118] sm:$0xff]
    %v66 = vld [vmem:[%s0 + $0x120] sm:$0xff]
    %v67 = vld [vmem:[%s0 + $0x128] sm:$0xff]
    %v68 = vld [vmem:[%s0 + $0x130] sm:$0xff]
    %v69 = vld [vmem:[%s0 + $0x138] sm:$0xff]
    %v70 = vld [vmem:[%s0 + $0x140] sm:$0xff]
    %v71 = vld [vmem:[%s0 + $0x148] sm:$0xff]
    %v72 = vld [vmem:[%s0 + $0x150] sm:$0xff]
    %v73 = vld [vmem:[%s0 + $0x158] sm:$0xff]
    %v74 = vld [vmem:[%s0 + $0x160] sm:$0xff]
    %v75 = vld [vmem:[%s0 + $0x168] sm:$0xff]
    %v76 = vld [vmem:[%s0 + $0x170] sm:$0xff]
    %v77 = vld [vmem:[%s0 + $0x178] sm:$0xff]
    %v78 = vld [vmem:[%s0 + $0x180] sm:$0xff]
    %v79 = vld [vmem:[%s0 + $0x188] sm:$0xff]
    %v80 = vld [vmem:[%s0 + $0x190] sm:$0xff]
    %v81 = vld [vmem:[%s0 + $0x198] sm:$0xff]
    %v82 = vld [vmem:[%s0 + $0x1a0] sm:$0xff]
    %v83 = vld [vmem:[%s0 + $0x1a8] sm:$0xff]
    %v84 = vld [vmem:[%s0 + $0x1b0] sm:$0xff]
    %v85 = vld [vmem:[%s0 + $0x1b8] sm:$0xff]
    %v86 = vld [vmem:[%s0 + $0x1c0] sm:$0xff]
    %v87 = vld [vmem:[%s0 + $0x1c8] sm:$0xff]
    %v88 = vld [vmem:[%s0 + $0x1d0] sm:$0xff]
    %v89 = vld [vmem:[%s0 + $0x1d8] sm:$0xff]
    %v90 = vld [vmem:[%s0 + $0x1e0] sm:$0xff]
    %v91 = vld [vmem:[%s0 + $0x1e8] sm:$0xff]
    %v92 = vld [vmem:[%s0 + $0x1f0] sm:$0xff]
    %v93 = vld [vmem:[%s0 + $0x1f8] sm:$0xff]
    %v94 = vld [vmem:[%s2] sm:$0x7f]
    %96 = vset.pattern.permute.xlu0 0
    %97 = vperm.xlu0 %96, %v94
    %v98 = vpop.permute.xlu0 %97
    %vm100 = vcmask 261120
    %v102 = vsel %vm100, %v29, 0
    %v105 = vsel %vm100, %v30, 0
    %v108 = vsel %vm100, %v31, 0
    %v111 = vsel %vm100, %v32, 0
    %v114 = vsel %vm100, %v33, 0
    %v117 = vsel %vm100, %v34, 0
    %v120 = vsel %vm100, %v35, 0
    %v123 = vsel %vm100, %v36, 0
    %v126 = vsel %vm100, %v37, 0
    %v129 = vsel %vm100, %v38, 0
    %v132 = vsel %vm100, %v39, 0
    %v135 = vsel %vm100, %v40, 0
    %v138 = vsel %vm100, %v41, 0
    %v141 = vsel %vm100, %v42, 0
    %v144 = vsel %vm100, %v43, 0
    %v147 = vsel %vm100, %v44, 0
    %v150 = vsel %vm100, %v45, 0
    %v153 = vsel %vm100, %v46, 0
    %v156 = vsel %vm100, %v47, 0
    %v159 = vsel %vm100, %v48, 0
    %v162 = vsel %vm100, %v49, 0
    %v165 = vsel %vm100, %v50, 0
    %v168 = vsel %vm100, %v51, 0
    %v171 = vsel %vm100, %v52, 0
    %v174 = vsel %vm100, %v53, 0
    %v177 = vsel %vm100, %v54, 0
    %v180 = vsel %vm100, %v55, 0
    %v183 = vsel %vm100, %v56, 0
    %v186 = vsel %vm100, %v57, 0
    %v189 = vsel %vm100, %v58, 0
    %v192 = vsel %vm100, %v59, 0
    %v195 = vsel %vm100, %v60, 0
    %v198 = vsel %vm100, %v61, 0
    %v201 = vsel %vm100, %v62, 0
    %v204 = vsel %vm100, %v63, 0
    %v207 = vsel %vm100, %v64, 0
    %v210 = vsel %vm100, %v65, 0
    %v213 = vsel %vm100, %v66, 0
    %v216 = vsel %vm100, %v67, 0
    %v219 = vsel %vm100, %v68, 0
    %v222 = vsel %vm100, %v69, 0
    %v225 = vsel %vm100, %v70, 0
    %v228 = vsel %vm100, %v71, 0
    %v231 = vsel %vm100, %v72, 0
    %v234 = vsel %vm100, %v73, 0
    %v237 = vsel %vm100, %v74, 0
    %v240 = vsel %vm100, %v75, 0
    %v243 = vsel %vm100, %v76, 0
    %v246 = vsel %vm100, %v77, 0
    %v249 = vsel %vm100, %v78, 0
    %v252 = vsel %vm100, %v79, 0
    %v255 = vsel %vm100, %v80, 0
    %v258 = vsel %vm100, %v81, 0
    %v261 = vsel %vm100, %v82, 0
    %v264 = vsel %vm100, %v83, 0
    %v267 = vsel %vm100, %v84, 0
    %v270 = vsel %vm100, %v85, 0
    %v273 = vsel %vm100, %v86, 0
    %v276 = vsel %vm100, %v87, 0
    %v279 = vsel %vm100, %v88, 0
    %v282 = vsel %vm100, %v89, 0
    %v285 = vsel %vm100, %v90, 0
    %v288 = vsel %vm100, %v91, 0
    %v291 = vsel %vm100, %v92, 0
    %v294 = vsel %vm100, %v93, 0
    %296 = vmatprep.subr.mxu0 0.0
    %297 = vmatpush1.xpose.msra.mxu0 %v105
    %298 = vmatprep.subr.mxu0 0.0
    %299 = vmatpush1.xpose.msra.mxu0 %v108
    %300 = vmatprep.subr.mxu0 0.0
    %301 = vmatpush1.xpose.msra.mxu0 %v111
    %302 = vmatprep.subr.mxu0 0.0
    %303 = vmatpush1.xpose.msra.mxu0 %v114
    %304 = vmatprep.subr.mxu0 0.0
    %305 = vmatpush1.xpose.msra.mxu0 %v117
    %306 = vmatprep.subr.mxu0 0.0
    %307 = vmatpush1.xpose.msra.mxu0 %v120
    %308 = vmatprep.subr.mxu0 0.0
    %309 = vmatpush1.xpose.msra.mxu0 %v123
    %310 = vmatprep.subr.mxu0 0.0
    %311 = vmatpush1.xpose.msra.mxu0 %v126
    %312 = vmatprep.subr.mxu0 0.0
    %313 = vmatpush1.xpose.msra.mxu0 %v129
    %314 = vmatprep.subr.mxu0 0.0
    %315 = vmatpush1.xpose.msra.mxu0 %v132
    %316 = vmatprep.subr.mxu0 0.0
    %317 = vmatpush1.xpose.msra.mxu0 %v135
    %318 = vmatprep.subr.mxu0 0.0
    %319 = vmatpush1.xpose.msra.mxu0 %v138
    %320 = vmatprep.subr.mxu0 0.0
    %321 = vmatpush1.xpose.msra.mxu0 %v141
    %322 = vmatprep.subr.mxu0 0.0
    %323 = vmatpush1.xpose.msra.mxu0 %v144
    %324 = vmatprep.subr.mxu0 0.0
    %325 = vmatpush1.xpose.msra.mxu0 %v147
    %326 = vmatprep.subr.mxu0 0.0
    %327 = vmatpush1.xpose.msra.mxu0 %v150
    %328 = vmatprep.subr.mxu0 0.0
    %329 = vmatpush1.xpose.msra.mxu0 %v153
    %330 = vmatprep.subr.mxu0 0.0
    %331 = vmatpush1.xpose.msra.mxu0 %v156
    %332 = vmatprep.subr.mxu0 0.0
    %333 = vmatpush1.xpose.msra.mxu0 %v159
    %334 = vmatprep.subr.mxu0 0.0
    %335 = vmatpush1.xpose.msra.mxu0 %v162
    %336 = vmatprep.subr.mxu0 0.0
    %337 = vmatpush1.xpose.msra.mxu0 %v165
    %338 = vmatprep.subr.mxu0 0.0
    %339 = vmatpush1.xpose.msra.mxu0 %v168
    %340 = vmatprep.subr.mxu0 0.0
    %341 = vmatpush1.xpose.msra.mxu0 %v171
    %342 = vmatprep.subr.mxu0 0.0
    %343 = vmatpush1.xpose.msra.mxu0 %v174
    %344 = vmatprep.subr.mxu0 0.0
    %345 = vmatpush1.xpose.msra.mxu0 %v177
    %346 = vmatprep.subr.mxu0 0.0
    %347 = vmatpush1.xpose.msra.mxu0 %v180
    %348 = vmatprep.subr.mxu0 0.0
    %349 = vmatpush1.xpose.msra.mxu0 %v183
    %350 = vmatprep.subr.mxu0 0.0
    %351 = vmatpush1.xpose.msra.mxu0 %v186
    %352 = vmatprep.subr.mxu0 0.0
    %353 = vmatpush1.xpose.msra.mxu0 %v189
    %354 = vmatprep.subr.mxu0 0.0
    %355 = vmatpush1.xpose.msra.mxu0 %v192
    %356 = vmatprep.subr.mxu0 0.0
    %357 = vmatpush1.xpose.msra.mxu0 %v195
    %358 = vmatprep.subr.mxu0 0.0
    %359 = vmatpush1.xpose.msra.mxu0 %v198
    %360 = vmatprep.mubr.f32.mxu0 0.0
    %361 = vmatmul.mubr.f32.gmra.mrb[0].mxu0 %v102
    %v362 = vpop.f32.mrb[0].mxu0
    %v363 = vadd.f32 %v98, %v362
    %v364 = vpop.f32.mrb[0].mxu0
    %v365 = vadd.f32 %v98, %v364
    %366 = vdwg.mxu0
    %367 = vmatprep.subr.mxu0 0.0
    %368 = vmatpush1.xpose.msra.mxu0 %v201
    %369 = vmatprep.subr.mxu0 0.0
    %370 = vmatpush1.xpose.msra.mxu0 %v204
    %371 = vmatprep.subr.mxu0 0.0
    %372 = vmatpush1.xpose.msra.mxu0 %v207
    %373 = vmatprep.subr.mxu0 0.0
    %374 = vmatpush1.xpose.msra.mxu0 %v210
    %375 = vmatprep.subr.mxu0 0.0
    %376 = vmatpush1.xpose.msra.mxu0 %v213
    %377 = vmatprep.subr.mxu0 0.0
    %378 = vmatpush1.xpose.msra.mxu0 %v216
    %379 = vmatprep.subr.mxu0 0.0
    %380 = vmatpush1.xpose.msra.mxu0 %v219
    %381 = vmatprep.subr.mxu0 0.0
    %382 = vmatpush1.xpose.msra.mxu0 %v222
    %383 = vmatprep.subr.mxu0 0.0
    %384 = vmatpush1.xpose.msra.mxu0 %v225
    %385 = vmatprep.subr.mxu0 0.0
    %386 = vmatpush1.xpose.msra.mxu0 %v228
    %387 = vmatprep.subr.mxu0 0.0
    %388 = vmatpush1.xpose.msra.mxu0 %v231
    %389 = vmatprep.subr.mxu0 0.0
    %390 = vmatpush1.xpose.msra.mxu0 %v234
    %391 = vmatprep.subr.mxu0 0.0
    %392 = vmatpush1.xpose.msra.mxu0 %v237
    %393 = vmatprep.subr.mxu0 0.0
    %394 = vmatpush1.xpose.msra.mxu0 %v240
    %395 = vmatprep.subr.mxu0 0.0
    %396 = vmatpush1.xpose.msra.mxu0 %v243
    %397 = vmatprep.subr.mxu0 0.0
    %398 = vmatpush1.xpose.msra.mxu0 %v246
    %399 = vmatprep.subr.mxu0 0.0
    %400 = vmatpush1.xpose.msra.mxu0 %v249
    %401 = vmatprep.subr.mxu0 0.0
    %402 = vmatpush1.xpose.msra.mxu0 %v252
    %403 = vmatprep.subr.mxu0 0.0
    %404 = vmatpush1.xpose.msra.mxu0 %v255
    %405 = vmatprep.subr.mxu0 0.0
    %406 = vmatpush1.xpose.msra.mxu0 %v258
    %407 = vmatprep.subr.mxu0 0.0
    %408 = vmatpush1.xpose.msra.mxu0 %v261
    %409 = vmatprep.subr.mxu0 0.0
    %410 = vmatpush1.xpose.msra.mxu0 %v264
    %411 = vmatprep.subr.mxu0 0.0
    %412 = vmatpush1.xpose.msra.mxu0 %v267
    %413 = vmatprep.subr.mxu0 0.0
    %414 = vmatpush1.xpose.msra.mxu0 %v270
    %415 = vmatprep.subr.mxu0 0.0
    %416 = vmatpush1.xpose.msra.mxu0 %v273
    %417 = vmatprep.subr.mxu0 0.0
    %418 = vmatpush1.xpose.msra.mxu0 %v276
    %419 = vmatprep.subr.mxu0 0.0
    %420 = vmatpush1.xpose.msra.mxu0 %v279
    %421 = vmatprep.subr.mxu0 0.0
    %422 = vmatpush1.xpose.msra.mxu0 %v282
    %423 = vmatprep.subr.mxu0 0.0
    %424 = vmatpush1.xpose.msra.mxu0 %v285
    %425 = vmatprep.subr.mxu0 0.0
    %426 = vmatpush1.xpose.msra.mxu0 %v288
    %427 = vmatprep.subr.mxu0 0.0
    %428 = vmatpush1.xpose.msra.mxu0 %v291
    %429 = vmatprep.subr.mxu0 0.0
    %430 = vmatpush1.xpose.msra.mxu0 %v294
    %431 = vmatprep.mubr.f32.mxu0 0.0
    %432 = vmatmul.mubr.f32.gmra.mrb[0].mxu0 %v102
    %v433 = vpop.f32.mrb[0].mxu0
    %v434 = vadd.f32 %v98, %v433
    %v435 = vpop.f32.mrb[0].mxu0
    %v436 = vadd.f32 %v98, %v435
    %437 = vdwg.mxu0
    %vm438 = vcmask 1046528
    %v439 = vsel %vm438, %v363, -inf
    %v440 = vrot.slane %v439, 4
    %v441 = vmax.f32 %v439, %v440
    %v442 = vrot.slane %v441, 2
    %v443 = vmax.f32 %v441, %v442
    %v444 = vrot.slane %v443, 1
    %v445 = vmax.f32 %v443, %v444
    %v446 = vsel %vm438, %v365, -inf
    %v447 = vrot.slane %v446, 4
    %v448 = vmax.f32 %v446, %v447
    %v449 = vrot.slane %v448, 2
    %v450 = vmax.f32 %v448, %v449
    %v451 = vrot.slane %v450, 1
    %v452 = vmax.f32 %v450, %v451
    %v453 = vsel %vm438, %v434, -inf
    %v454 = vrot.slane %v453, 4
    %v455 = vmax.f32 %v453, %v454
    %v456 = vrot.slane %v455, 2
    %v457 = vmax.f32 %v455, %v456
    %v458 = vrot.slane %v457, 1
    %v459 = vmax.f32 %v457, %v458
    %v460 = vsel %vm438, %v436, -inf
    %v461 = vrot.slane %v460, 4
    %v462 = vmax.f32 %v460, %v461
    %v463 = vrot.slane %v462, 2
    %v464 = vmax.f32 %v462, %v463
    %v465 = vrot.slane %v464, 1
    %v466 = vmax.f32 %v464, %v465
    %v467 = vsub.f32 %v363, %v445
    %v468 = vsub.f32 %v365, %v452
    %v469 = vsub.f32 %v434, %v459
    %v470 = vsub.f32 %v436, %v466
    %v471 = vmul.f32 %v467, 1.442695
    %v472 = vpow.pop %v471
    %v473 = vmul.f32 %v468, 1.442695
    %v474 = vpow.pop %v473
    %v475 = vmul.f32 %v469, 1.442695
    %v476 = vpow.pop %v475
    %v477 = vmul.f32 %v470, 1.442695
    %v478 = vpow.pop %v477
    %v479 = vsel %vm438, %v472, 0.0
    %v480 = vrot.slane %v479, 4
    %v481 = vadd.f32 %v479, %v480
    %v482 = vrot.slane %v481, 2
    %v483 = vadd.f32 %v481, %v482
    %v484 = vrot.slane %v483, 1
    %v485 = vadd.f32 %v483, %v484
    %v486 = vsel %vm438, %v474, 0.0
    %v487 = vrot.slane %v486, 4
    %v488 = vadd.f32 %v486, %v487
    %v489 = vrot.slane %v488, 2
    %v490 = vadd.f32 %v488, %v489
    %v491 = vrot.slane %v490, 1
    %v492 = vadd.f32 %v490, %v491
    %v493 = vsel %vm438, %v476, 0.0
    %v494 = vrot.slane %v493, 4
    %v495 = vadd.f32 %v493, %v494
    %v496 = vrot.slane %v495, 2
    %v497 = vadd.f32 %v495, %v496
    %v498 = vrot.slane %v497, 1
    %v499 = vadd.f32 %v497, %v498
    %v500 = vsel %vm438, %v478, 0.0
    %v501 = vrot.slane %v500, 4
    %v502 = vadd.f32 %v500, %v501
    %v503 = vrot.slane %v502, 2
    %v504 = vadd.f32 %v502, %v503
    %v505 = vrot.slane %v504, 1
    %v506 = vadd.f32 %v504, %v505
    %v507 = vlog2.pop %v485
    %v508 = vmul.f32 %v507, 0.6931472
    %v509 = vlog2.pop %v492
    %v510 = vmul.f32 %v509, 0.6931472
    %v511 = vlog2.pop %v499
    %v512 = vmul.f32 %v511, 0.6931472
    %v513 = vlog2.pop %v506
    %v514 = vmul.f32 %v513, 0.6931472
    %v515 = vadd.f32 %v445, %v508
    %v516 = vadd.f32 %v452, %v510
    %v517 = vadd.f32 %v459, %v512
    %v518 = vadd.f32 %v466, %v514
    %v519 = vsub.f32 %v363, %v515
    %v520 = vsub.f32 %v365, %v516
    %v521 = vsub.f32 %v434, %v517
    %v522 = vsub.f32 %v436, %v518
    %v523 = vld [vmem:[%s3] sm:$0xf]
    %v524 = vlaneseq
    %v525 = vshrl.u32 %v524, 7
    %v526 = vlaneseq
    %v527 = vshrl.u32 %v526, 7
    %v528 = vsub.s32 0, %v527
    %v529 = vrot.slane %v523, %v528
    %v530 = vlaneseq
    %v531 = vshrl.u32 %v530, 7
    %v532 = vsub.s32 1, %v531
    %v533 = vrot.slane %v523, %v532
    %v534 = vlaneseq
    %v535 = vshrl.u32 %v534, 7
    %v536 = vsub.s32 2, %v535
    %v537 = vrot.slane %v523, %v536
    %v538 = vlaneseq
    %v539 = vshrl.u32 %v538, 7
    %v540 = vsub.s32 3, %v539
    %v541 = vrot.slane %v523, %v540
    %vm542 = vcmp.eq.s32.totalorder %v525, %v529
    %vm543 = vcmp.eq.s32.totalorder %v525, %v533
    %vm544 = vcmp.eq.s32.totalorder %v525, %v537
    %vm545 = vcmp.eq.s32.totalorder %v525, %v541
    %v546 = vsel %vm542, 1, 0
    %v547 = vsel %vm543, 1, 0
    %v548 = vsel %vm544, 1, 0
    %v549 = vsel %vm545, 1, 0
    %v550 = vcvt.s32.f32 %v546
    %v551 = vcvt.s32.f32 %v547
    %v552 = vcvt.s32.f32 %v548
    %v553 = vcvt.s32.f32 %v549
    %v554 = vmul.f32 %v550, 0.9
    %v555 = vmul.f32 %v551, 0.9
    %v556 = vmul.f32 %v552, 0.9
    %v557 = vmul.f32 %v553, 0.9
    %v558 = vadd.f32 %v554, 0.014285714
    %v559 = vadd.f32 %v555, 0.014285714
    %v560 = vadd.f32 %v556, 0.014285714
    %v561 = vadd.f32 %v557, 0.014285714
    %v562 = vmul.f32 %v519, %v558
    %v563 = vmul.f32 %v520, %v559
    %v564 = vmul.f32 %v521, %v560
    %v565 = vmul.f32 %v522, %v561
    %v566 = vsel %vm438, %v562, 0.0
    %v567 = vrot.slane %v566, 4
    %v568 = vadd.f32 %v566, %v567
    %v569 = vrot.slane %v568, 2
    %v570 = vadd.f32 %v568, %v569
    %v571 = vrot.slane %v570, 1
    %v572 = vadd.f32 %v570, %v571
    %v573 = vsel %vm438, %v563, 0.0
    %v574 = vrot.slane %v573, 4
    %v575 = vadd.f32 %v573, %v574
    %v576 = vrot.slane %v575, 2
    %v577 = vadd.f32 %v575, %v576
    %v578 = vrot.slane %v577, 1
    %v579 = vadd.f32 %v577, %v578
    %v580 = vsel %vm438, %v564, 0.0
    %v581 = vrot.slane %v580, 4
    %v582 = vadd.f32 %v580, %v581
    %v583 = vrot.slane %v582, 2
    %v584 = vadd.f32 %v582, %v583
    %v585 = vrot.slane %v584, 1
    %v586 = vadd.f32 %v584, %v585
    %v587 = vsel %vm438, %v565, 0.0
    %v588 = vrot.slane %v587, 4
    %v589 = vadd.f32 %v587, %v588
    %v590 = vrot.slane %v589, 2
    %v591 = vadd.f32 %v589, %v590
    %v592 = vrot.slane %v591, 1
    %v593 = vadd.f32 %v591, %v592
    %v594 = vsub.f32 0.0, %v572
    %v595 = vsub.f32 0.0, %v579
    %v596 = vsub.f32 0.0, %v586
    %v597 = vsub.f32 0.0, %v593
    %vm598 = vcmp.gt.s32.totalorder %v523, 0
    %v599 = vsel %vm598, 1, 0
    %v600 = vcvt.s32.f32 %v599
    %vm601 = vcmp.eq.f32.partialorder %v363, %v445
    %vm602 = vcmp.eq.f32.partialorder %v365, %v452
    %vm603 = vcmp.eq.f32.partialorder %v434, %v459
    %vm604 = vcmp.eq.f32.partialorder %v436, %v466
    %v605 = vsel %vm601, %v525, 7
    %v606 = vsel %vm602, %v525, 7
    %v607 = vsel %vm603, %v525, 7
    %v608 = vsel %vm604, %v525, 7
    %v609 = vsel %vm438, %v605, 2147483647
    %v610 = vrot.slane %v609, 4
    %vm611 = vcmp.lt.s32.totalorder %v609, %v610
    %v612 = vsel %vm611, %v609, %v610
    %v613 = vrot.slane %v612, 2
    %vm614 = vcmp.lt.s32.totalorder %v612, %v613
    %v615 = vsel %vm614, %v612, %v613
    %v616 = vrot.slane %v615, 1
    %vm617 = vcmp.lt.s32.totalorder %v615, %v616
    %v618 = vsel %vm617, %v615, %v616
    %v619 = vsel %vm438, %v606, 2147483647
    %v620 = vrot.slane %v619, 4
    %vm621 = vcmp.lt.s32.totalorder %v619, %v620
    %v622 = vsel %vm621, %v619, %v620
    %v623 = vrot.slane %v622, 2
    %vm624 = vcmp.lt.s32.totalorder %v622, %v623
    %v625 = vsel %vm624, %v622, %v623
    %v626 = vrot.slane %v625, 1
    %vm627 = vcmp.lt.s32.totalorder %v625, %v626
    %v628 = vsel %vm627, %v625, %v626
    %v629 = vsel %vm438, %v607, 2147483647
    %v630 = vrot.slane %v629, 4
    %vm631 = vcmp.lt.s32.totalorder %v629, %v630
    %v632 = vsel %vm631, %v629, %v630
    %v633 = vrot.slane %v632, 2
    %vm634 = vcmp.lt.s32.totalorder %v632, %v633
    %v635 = vsel %vm634, %v632, %v633
    %v636 = vrot.slane %v635, 1
    %vm637 = vcmp.lt.s32.totalorder %v635, %v636
    %v638 = vsel %vm637, %v635, %v636
    %v639 = vsel %vm438, %v608, 2147483647
    %v640 = vrot.slane %v639, 4
    %vm641 = vcmp.lt.s32.totalorder %v639, %v640
    %v642 = vsel %vm641, %v639, %v640
    %v643 = vrot.slane %v642, 2
    %vm644 = vcmp.lt.s32.totalorder %v642, %v643
    %v645 = vsel %vm644, %v642, %v643
    %v646 = vrot.slane %v645, 1
    %vm647 = vcmp.lt.s32.totalorder %v645, %v646
    %v648 = vsel %vm647, %v645, %v646
    %v649 = vcombine.low %v618, %v628
    %v650 = vcombine.low %v638, %v648
    %v652 = vunpack.c.l.s4 1966171168
    %v653 = vunpack.c.0.s8 %v652
    %v654 = vlaneseq
    %v655 = vshrl.u32 %v654, 7
    %v656 = vsub.s32 %v653, %v655
    %v657 = vrot.slane %v649, %v656
    %v659 = vunpack.c.l.s4 1966171168
    %v660 = vunpack.c.0.s8 %v659
    %v661 = vlaneseq
    %v662 = vshrl.u32 %v661, 7
    %v663 = vsub.s32 %v660, %v662
    %v664 = vrot.slane %v650, %v663
    %v665 = vcombine.low %v657, %v664
    %v667 = vunpack.c.l.s4 1966171168
    %v668 = vunpack.c.0.s8 %v667
    %v669 = vlaneseq
    %v670 = vshrl.u32 %v669, 7
    %v671 = vsub.s32 %v668, %v670
    %v672 = vrot.slane %v665, %v671
    %v673 = vlaneseq
    %vm674 = vcmp.ge.s32.totalorder %v673, 0
    %vm675 = vcmp.lt.s32.totalorder %v673, 512
    %vm676 = vmand %vm674, %vm675
    %677 = vst.msk [vmem:[%s6] sm:$0xf] %vm676, %v672
    %v678 = vld [vmem:[#allocation2] sm:$0x1]
    %v683 = vcombine.low %v594, %v595
    %v684 = vcombine.low %v596, %v597
    %v686 = vunpack.c.l.s4 1966171168
    %v687 = vunpack.c.0.s8 %v686
    %v688 = vlaneseq
    %v689 = vshrl.u32 %v688, 7
    %v690 = vsub.s32 %v687, %v689
    %v691 = vrot.slane %v683, %v690
    %v693 = vunpack.c.l.s4 1966171168
    %v694 = vunpack.c.0.s8 %v693
    %v695 = vlaneseq
    %v696 = vshrl.u32 %v695, 7
    %v697 = vsub.s32 %v694, %v696
    %v698 = vrot.slane %v684, %v697
    %v699 = vcombine.low %v691, %v698
    %v701 = vunpack.c.l.s4 1966171168
    %v702 = vunpack.c.0.s8 %v701
    %v703 = vlaneseq
    %v704 = vshrl.u32 %v703, 7
    %v705 = vsub.s32 %v702, %v704
    %v706 = vrot.slane %v699, %v705
    %v708 = vmul.f32 %v600, %v706
    %v710 = vlaneseq
    %v711 = vshrl.u32 %v710, 7
    %v712 = vsub.s32 0, %v711
    %v713 = vrot.slane %v708, %v712
    %v714 = vlaneseq
    %v715 = vshrl.u32 %v714, 7
    %v716 = vsub.s32 1, %v715
    %v717 = vrot.slane %v708, %v716
    %v718 = vlaneseq
    %v719 = vshrl.u32 %v718, 7
    %v720 = vsub.s32 2, %v719
    %v721 = vrot.slane %v708, %v720
    %v722 = vlaneseq
    %v723 = vshrl.u32 %v722, 7
    %v724 = vsub.s32 3, %v723
    %v725 = vrot.slane %v708, %v724
    %vm730 = vcmask 1040384
    %v731 = vsel %vm730, %v713, 0.0
    %v732 = vsel %vm730, %v717, 0.0
    %v733 = vadd.f32 %v731, %v732
    %v734 = vsel %vm730, %v721, 0.0
    %v735 = vadd.f32 %v733, %v734
    %v736 = vsel %vm730, %v725, 0.0
    %v737 = vadd.f32 %v735, %v736
    %738 = vadd.xlane.f32.xlu0 %v737
    %v739 = vpop.xlane.xlu0 %738
    %v740 = vadd.f32 %v678, %v739
    %vm741 = vcmask 0
    %742 = vst.msk [vmem:[#allocation2] sm:$0x1] %vm741, %v740
    %v743 = vld [vmem:[#allocation4] sm:$0x1]
    %vm744 = vcmp.eq.s32.totalorder %v618, %v529
    %vm745 = vcmp.eq.s32.totalorder %v628, %v533
    %vm746 = vcmp.eq.s32.totalorder %v638, %v537
    %vm747 = vcmp.eq.s32.totalorder %v648, %v541
    %v748 = vsel %vm744, 1, 0
    %v749 = vsel %vm745, 1, 0
    %v750 = vsel %vm746, 1, 0
    %v751 = vsel %vm747, 1, 0
    %v752 = vcvt.s32.f32 %v748
    %v753 = vcvt.s32.f32 %v749
    %v754 = vcvt.s32.f32 %v750
    %v755 = vcvt.s32.f32 %v751
    %v760 = vcombine.low %v752, %v753
    %v761 = vcombine.low %v754, %v755
    %v763 = vunpack.c.l.s4 1966171168
    %v764 = vunpack.c.0.s8 %v763
    %v765 = vlaneseq
    %v766 = vshrl.u32 %v765, 7
    %v767 = vsub.s32 %v764, %v766
    %v768 = vrot.slane %v760, %v767
    %v770 = vunpack.c.l.s4 1966171168
    %v771 = vunpack.c.0.s8 %v770
    %v772 = vlaneseq
    %v773 = vshrl.u32 %v772, 7
    %v774 = vsub.s32 %v771, %v773
    %v775 = vrot.slane %v761, %v774
    %v776 = vcombine.low %v768, %v775
    %v778 = vunpack.c.l.s4 1966171168
    %v779 = vunpack.c.0.s8 %v778
    %v780 = vlaneseq
    %v781 = vshrl.u32 %v780, 7
    %v782 = vsub.s32 %v779, %v781
    %v783 = vrot.slane %v776, %v782
    %v785 = vmul.f32 %v600, %v783
    %v787 = vlaneseq
    %v788 = vshrl.u32 %v787, 7
    %v789 = vsub.s32 0, %v788
    %v790 = vrot.slane %v785, %v789
    %v791 = vlaneseq
    %v792 = vshrl.u32 %v791, 7
    %v793 = vsub.s32 1, %v792
    %v794 = vrot.slane %v785, %v793
    %v795 = vlaneseq
    %v796 = vshrl.u32 %v795, 7
    %v797 = vsub.s32 2, %v796
    %v798 = vrot.slane %v785, %v797
    %v799 = vlaneseq
    %v800 = vshrl.u32 %v799, 7
    %v801 = vsub.s32 3, %v800
    %v802 = vrot.slane %v785, %v801
    %v807 = vsel %vm730, %v790, 0.0
    %v808 = vsel %vm730, %v794, 0.0
    %v809 = vadd.f32 %v807, %v808
    %v810 = vsel %vm730, %v798, 0.0
    %v811 = vadd.f32 %v809, %v810
    %v812 = vsel %vm730, %v802, 0.0
    %v813 = vadd.f32 %v811, %v812
    %814 = vadd.xlane.f32.xlu0 %v813
    %v815 = vpop.xlane.xlu0 %814
    %v816 = vadd.f32 %v743, %v815
    %817 = vst.msk [vmem:[#allocation4] sm:$0x1] %vm741, %v816
    // Predicated region
    $region22: #{only_lstm_forward.3} parent=1 // pred_check
      _
    $region23: #{only_lstm_forward.3} parent=1 // pred_check_branch
      %819 = sbr.rel (0) target = $region25
    $region24: #{only_lstm_forward.3} parent=1 // pred_region
      %s821 = ssub.s32 16, 16
      %822 = vsyncadd [#allocation3], %s821
      %s824 = sshll.u32 [#allocation2], 4
      %s825 = int_to_ptr.vmem [resolvable:$true] %s824
      %827 = dma.vmem_to_hbm [thread:$0]  %s825, 16, %s4, [#allocation3]
    $region25: #{only_lstm_forward.3} parent=1 // pred_fallthru
      _
    // Predicated region
    $region26: #{only_lstm_forward.3} parent=1 // pred_check
      _
    $region27: #{only_lstm_forward.3} parent=1 // pred_check_branch
      %829 = sbr.rel (0) target = $region29
    $region28: #{only_lstm_forward.3} parent=1 // pred_region
      %s831 = ssub.s32 16, 16
      %832 = vsyncadd [#allocation5], %s831
      %s834 = sshll.u32 [#allocation4], 4
      %s835 = int_to_ptr.vmem [resolvable:$true] %s834
      %837 = dma.vmem_to_hbm [thread:$0]  %s835, 16, %s5, [#allocation5]
    $region29: #{only_lstm_forward.3} parent=1 // pred_fallthru
      _
    // Predicated region
    $region30: #{only_lstm_forward.3} parent=1 // pred_check
      _
    $region31: #{only_lstm_forward.3} parent=1 // pred_check_branch
      %839 = sbr.rel (0) target = $region33
    $region32: #{only_lstm_forward.3} parent=1 // pred_region
      _
    $region33: #{only_lstm_forward.3} parent=1 // pred_fallthru
      _
    // Predicated region
    $region34: #{only_lstm_forward.3} parent=1 // pred_check
      _
    $region35: #{only_lstm_forward.3} parent=1 // pred_check_branch
      %841 = sbr.rel (0) target = $region37
    $region36: #{only_lstm_forward.3} parent=1 // pred_region
      %842 = dma.done [#allocation3], 16
    $region37: #{only_lstm_forward.3} parent=1 // pred_fallthru
      _
    // Predicated region
    $region38: #{only_lstm_forward.3} parent=1 // pred_check
      _
    $region39: #{only_lstm_forward.3} parent=1 // pred_check_branch
      %844 = sbr.rel (0) target = $region41
    $region40: #{only_lstm_forward.3} parent=1 // pred_region
      %845 = dma.done [#allocation5], 16
    $region41: #{only_lstm_forward.3} parent=1 // pred_fallthru
      _
    // Predicated region
    $region42: #{only_lstm_forward.3} parent=1 // pred_check
      _
    $region43: #{only_lstm_forward.3} parent=1 // pred_check_branch
      %847 = sbr.rel (0) target = $region45
    $region44: #{only_lstm_forward.3} parent=1 // pred_region
      _
    $region45: #{only_lstm_forward.3} parent=1 // pred_fallthru
      _
    %848 = vsyncpa [#allocation3], 1
    %849 = vsyncpa [#allocation5], 1

</llo_original>
